<compile_context>
chip_gen: v5e
topology: v5e:2x2
jax: 0.10.0
libtpu: 0.0.40
codegen_flags: <defaults>
</compile_context>

<pallas_src>
import jax
import jax.numpy as jnp
from jax.experimental import pallas as pl
from jax.experimental.pallas import tpu as pltpu


# ------------------------------ fused kernel --------------------------------

def fused_kernel(x_ref, cw_ref, cb_ref, wi_ref, bi_ref, wh_ref, bh_ref,
                 fcw_ref, fcb_ref, o_ref, gi_scr):
    # x_ref  : (B, T, C_in)      f32
    # cw_ref : (K*C_in, C_out)   bf16   im2col-reshaped conv weight
    # cb_ref : (1, C_out)        f32
    # wi_ref : (C_out, 3*Hp)     bf16   gate columns lane-padded to Hp each
    # bi_ref : (1, 3*Hp)         f32
    # wh_ref : (Hp, 3*Hp)        bf16
    # bh_ref : (1, 3*Hp)         f32
    # fcw_ref: (Hp, O)           bf16   rows >= H are zero
    # fcb_ref: (1, O)            f32
    # o_ref  : (B, O)            f32
    # gi_scr : (T_out, B, 3*Hp)  f32    time-major GRU input projections
    B, T, C_in = x_ref.shape
    KC, C_out = cw_ref.shape
    K = KC // C_in
    T_out = T - K + 1
    Hp = wh_ref.shape[0]
    G = 3 * Hp

    # ---------------- prologue (off the serial recurrence path) --------------
    x = x_ref[...]                                         # single load of x

    # Conv1d (valid) + bias + ReLU as a single lane-axis im2col matmul.
    patches = jnp.concatenate([x[:, k:k + T_out, :] for k in range(K)], axis=-1)
    patches = patches.reshape(B * T_out, KC).astype(jnp.bfloat16)
    conv = jnp.maximum(
        jnp.dot(patches, cw_ref[...], preferred_element_type=jnp.float32)
        + cb_ref[0], 0.0)                                  # (B*T_out, C_out) f32

    # GRU input projections for ALL timesteps in one matmul (gate order [r|z|n]),
    # then relayout ONCE into the time-major scratch so every scan step reads a
    # single aligned (B, 3*Hp) tile instead of doing a strided sublane gather.
    gi = jnp.dot(conv.astype(jnp.bfloat16), wi_ref[...],
                 preferred_element_type=jnp.float32) + bi_ref[0]
    gi3 = gi.reshape(B, T_out, G)
    for t in range(T_out):                                 # one-time scatter
        gi_scr[t] = gi3[:, t, :]

    # ---------------- serial GRU scan (statically unrolled) ------------------
    wh = wh_ref[...]                                       # hoisted (bf16)
    bh = jnp.broadcast_to(bh_ref[...], (B, G))             # hoisted broadcast
    h = jnp.zeros((B, Hp), jnp.float32)
    # TODO(synk): weight-stationary MXU (pltpu.matmul_push_rhs/acc_lhs/pop) would
    # avoid re-streaming wh every step; kept jnp.dot for lowering robustness.
    for t in range(T_out):                                 # T_out static (=9)
        gi_t = gi_scr[t]                                   # aligned tile load
        gh = jnp.dot(h.astype(jnp.bfloat16), wh,
                     preferred_element_type=jnp.float32) + bh
        # Gate boundaries sit exactly on 128-lane vreg edges (Hp = 128);
        # r and z share one full-width sigmoid push.
        rz = jax.nn.sigmoid(gi_t[:, :2 * Hp] + gh[:, :2 * Hp])
        r = rz[:, :Hp]
        z = rz[:, Hp:]
        n = jnp.tanh(gi_t[:, 2 * Hp:] + r * gh[:, 2 * Hp:])
        h = (1.0 - z) * n + z * h
        # Padded lanes stay exactly 0 (zero-padded weights/biases at pack time).

    # TODO(synk): nn.Dropout is identity at inference; training-mode stochastic
    # dropout (pltpu.prng_*) is intentionally not applied here.
    logits = jnp.dot(h.astype(jnp.bfloat16), fcw_ref[...],
                     preferred_element_type=jnp.float32) + fcb_ref[0]
    o_ref[...] = jax.nn.sigmoid(logits)


# ------------------------------- wrappers ------------------------------------

def pack_params(p):
    """One-time repacking: torch layouts -> kernel layouts.

    * conv weight reshaped for lane-axis im2col: (K*C_in, C_out)
    * GRU gate columns zero-padded H=64 -> Hp=128 so every gate slice is
      vreg-aligned; fc weight rows padded to Hp with zeros
    * matmul weights cast to bf16 (MXU-native); biases stay f32
    """
    conv_w = p["conv_w_kio"]                      # (K, C_in, C_out)
    K, C_in, C_out = conv_w.shape
    H = p["w_hh"].shape[1]
    O = p["fc_w"].shape[0]
    Hp = max(128, -(-H // 128) * 128)             # lane-aligned hidden size

    def pad_gate_cols(w):                         # (rows, 3H) -> (rows, 3Hp)
        out = jnp.zeros((w.shape[0], 3 * Hp), jnp.float32)
        for g in range(3):
            out = out.at[:, g * Hp:g * Hp + H].set(w[:, g * H:(g + 1) * H])
        return out

    wh = jnp.zeros((Hp, 3 * Hp), jnp.float32).at[:H, :].set(pad_gate_cols(p["w_hh"].T))
    fcw = jnp.zeros((Hp, O), jnp.float32).at[:H, :].set(p["fc_w"].T)
    return {
        "cw": conv_w.reshape(K * C_in, C_out).astype(jnp.bfloat16),
        "cb": p["conv_b"].reshape(1, C_out).astype(jnp.float32),
        "wi": pad_gate_cols(p["w_ih"].T).astype(jnp.bfloat16),   # (C_out, 3Hp)
        "bi": pad_gate_cols(p["b_ih"].reshape(1, 3 * H)),
        "wh": wh.astype(jnp.bfloat16),                           # (Hp, 3Hp)
        "bh": pad_gate_cols(p["b_hh"].reshape(1, 3 * H)),
        "fcw": fcw.astype(jnp.bfloat16),                         # (Hp, O)
        "fcb": p["fc_b"].reshape(1, O).astype(jnp.float32),
    }


def mental_cnngru_forward(x, packed):
    B, T, C_in = x.shape
    KC, _ = packed["cw"].shape
    K = KC // C_in
    T_out = T - K + 1
    Hp = packed["wh"].shape[0]
    O = packed["fcw"].shape[1]
    vmem = pl.BlockSpec(memory_space=pltpu.MemorySpace.VMEM)
    # NOTE (v7x scaling): everything is <0.5 MB and latency-bound on the serial
    # scan, so a grid-less single invocation is right here. Sublane padding makes
    # batches up to 8 free per call; beyond that, add a leading "parallel" batch
    # grid axis so both v7x TensorCores get work and VMEM stays bounded.
    return pl.pallas_call(
        fused_kernel,
        out_shape=jax.ShapeDtypeStruct((B, O), jnp.float32),
        in_specs=[vmem] * 9,
        out_specs=vmem,
        scratch_shapes=[pltpu.VMEM((T_out, B, 3 * Hp), jnp.float32)],
    )(x, packed["cw"], packed["cb"], packed["wi"], packed["bi"],
      packed["wh"], packed["bh"], packed["fcw"], packed["fcb"])


# ------------------------- pure-JAX reference check -------------------------

def reference_forward(x, p):
    # conv1d (valid) + relu
    w = p["conv_w_kio"]                                   # (K, C_in, C_out)
    K = w.shape[0]
    T_out = x.shape[1] - K + 1
    acc = sum(jnp.einsum("bti,io->bto", x[:, k:k + T_out, :], w[k])
              for k in range(K)) + p["conv_b"]
    c = jnp.maximum(acc, 0.0)                             # (B, T_out, C_out)
    # GRU (gate order [r|z|n], PyTorch semantics)
    H = p["w_hh"].shape[1]
    w_ih, w_hh, b_ih, b_hh = p["w_ih"], p["w_hh"], p["b_ih"], p["b_hh"]
    h = jnp.zeros((x.shape[0], H), jnp.float32)
    for t in range(T_out):
        x_t = c[:, t, :]
        gi = x_t @ w_ih.T + b_ih
        gh = h @ w_hh.T + b_hh
        r = jax.nn.sigmoid(gi[:, :H] + gh[:, :H])
        z = jax.nn.sigmoid(gi[:, H:2 * H] + gh[:, H:2 * H])
        n = jnp.tanh(gi[:, 2 * H:] + r * gh[:, 2 * H:])
        h = (1.0 - z) * n + z * h
    return jax.nn.sigmoid(h @ p["fc_w"].T + p["fc_b"])


# --------------------------------- main --------------------------------------

def make_params(key, input_dim, cnn_out, K, H, out_size):
    ks = jax.random.split(key, 8)

    def u(k, shape, fan):
        b = 1.0 / jnp.sqrt(fan)
        return jax.random.uniform(k, shape, jnp.float32, -b, b)

    conv_w = u(ks[0], (cnn_out, input_dim, K), input_dim * K)  # torch layout
    return {
        "conv_w_kio": jnp.transpose(conv_w, (2, 1, 0)),        # (K, C_in, C_out)
        "conv_b": u(ks[1], (cnn_out,), input_dim * K),
        "w_ih": u(ks[2], (3 * H, cnn_out), H),
        "w_hh": u(ks[3], (3 * H, H), H),
        "b_ih": u(ks[4], (3 * H,), H),
        "b_hh": u(ks[5], (3 * H,), H),
        "fc_w": u(ks[6], (out_size, H), H),
        "fc_b": u(ks[7], (out_size,), H),
    }


if __name__ == "__main__":
    B, T = 2, 12
    input_dim, cnn_out, K, H, out_size = 30, 256, 4, 64, 1

    key = jax.random.PRNGKey(0)
    kx, kp = jax.random.split(key)
    x = jax.random.normal(kx, (B, T, input_dim), jnp.float32)
    params = make_params(kp, input_dim, cnn_out, K, H, out_size)
    packed = pack_params(params)          # one-time weight repack/pad/bf16-cast

    out = jax.block_until_ready(mental_cnngru_forward(x, packed))
    ref = jax.block_until_ready(reference_forward(x, params))
    assert out.shape == (B, out_size)
    # bf16 MXU operands (f32 accumulation) -> compare against the f32 reference
    # with a correspondingly looser tolerance.
    assert jnp.allclose(out, ref, rtol=2e-2, atol=2e-2), (out, ref)
    print("KERNEL_OK")
</pallas_src>

<mosaic_0001>
module attributes {stable_mosaic.version = 11 : i64} {
  func.func @fused_kernel(%arg0: memref<2x12x30xf32, #tpu.memory_space<vmem>>, %arg1: memref<120x256xbf16, #tpu.memory_space<vmem>>, %arg2: memref<1x256xf32, #tpu.memory_space<vmem>>, %arg3: memref<256x384xbf16, #tpu.memory_space<vmem>>, %arg4: memref<1x384xf32, #tpu.memory_space<vmem>>, %arg5: memref<128x384xbf16, #tpu.memory_space<vmem>>, %arg6: memref<1x384xf32, #tpu.memory_space<vmem>>, %arg7: memref<128x1xbf16, #tpu.memory_space<vmem>>, %arg8: memref<1x1xf32, #tpu.memory_space<vmem>>, %arg9: memref<2x1xf32, #tpu.memory_space<vmem>>, %arg10: memref<9x2x384xf32, #tpu.memory_space<vmem>>) attributes {dimension_semantics = [], scalar_prefetch = 0 : i64, scratch_operands = 1 : i64, tpu.core_type = #tpu.core_type<tc>} {
    %c0 = arith.constant 0 : index
    %c0_0 = arith.constant 0 : index
    %c0_1 = arith.constant 0 : index
    %0 = vector.load %arg0[%c0, %c0_0, %c0_1] : memref<2x12x30xf32, #tpu.memory_space<vmem>>, vector<2x12x30xf32>
    %1 = vector.extract_strided_slice %0 {offsets = [0, 0, 0], sizes = [2, 9, 30], strides = [1, 1, 1]} : vector<2x12x30xf32> to vector<2x9x30xf32>
    %2 = vector.extract_strided_slice %0 {offsets = [0, 1, 0], sizes = [2, 9, 30], strides = [1, 1, 1]} : vector<2x12x30xf32> to vector<2x9x30xf32>
    %3 = vector.extract_strided_slice %0 {offsets = [0, 2, 0], sizes = [2, 9, 30], strides = [1, 1, 1]} : vector<2x12x30xf32> to vector<2x9x30xf32>
    %4 = vector.extract_strided_slice %0 {offsets = [0, 3, 0], sizes = [2, 9, 30], strides = [1, 1, 1]} : vector<2x12x30xf32> to vector<2x9x30xf32>
    %5 = tpu.concatenate %1, %2, %3, %4 in 2 : vector<2x9x30xf32>, vector<2x9x30xf32>, vector<2x9x30xf32>, vector<2x9x30xf32> -> vector<2x9x120xf32>
    %6 = vector.shape_cast %5 : vector<2x9x120xf32> to vector<18x120xf32>
    %7 = arith.truncf %6 : vector<18x120xf32> to vector<18x120xbf16>
    %c0_2 = arith.constant 0 : index
    %c0_3 = arith.constant 0 : index
    %8 = vector.load %arg1[%c0_2, %c0_3] : memref<120x256xbf16, #tpu.memory_space<vmem>>, vector<120x256xbf16>
    %cst = arith.constant dense<0.000000e+00> : vector<18x256xf32>
    %9 = tpu.matmul %7, %8, %cst {dimension_numbers = #tpu.dot_dimension_numbers<[1], [0], [0], [1], [0, 0, 1, 1], [], []>} : vector<18x120xbf16>, vector<120x256xbf16>, vector<18x256xf32> -> vector<18x256xf32>
    %c0_4 = arith.constant 0 : index
    %c0_5 = arith.constant 0 : index
    %10 = vector.load %arg2[%c0_4, %c0_5] : memref<1x256xf32, #tpu.memory_space<vmem>>, vector<1x256xf32>
    %11 = vector.shape_cast %10 : vector<1x256xf32> to vector<256xf32>
    %12 = vector.shape_cast %11 : vector<256xf32> to vector<1x256xf32>
    %13 = vector.broadcast %12 : vector<1x256xf32> to vector<18x256xf32>
    %14 = arith.addf %9, %13 : vector<18x256xf32>
    %cst_6 = arith.constant 0.000000e+00 : f32
    %15 = vector.broadcast %cst_6 : f32 to vector<18x256xf32>
    %16 = arith.maximumf %14, %15 : vector<18x256xf32>
    %17 = arith.truncf %16 : vector<18x256xf32> to vector<18x256xbf16>
    %c0_7 = arith.constant 0 : index
    %c0_8 = arith.constant 0 : index
    %18 = vector.load %arg3[%c0_7, %c0_8] : memref<256x384xbf16, #tpu.memory_space<vmem>>, vector<256x384xbf16>
    %cst_9 = arith.constant dense<0.000000e+00> : vector<18x384xf32>
    %19 = tpu.matmul %17, %18, %cst_9 {dimension_numbers = #tpu.dot_dimension_numbers<[1], [0], [0], [1], [0, 0, 1, 1], [], []>} : vector<18x256xbf16>, vector<256x384xbf16>, vector<18x384xf32> -> vector<18x384xf32>
    %c0_10 = arith.constant 0 : index
    %c0_11 = arith.constant 0 : index
    %20 = vector.load %arg4[%c0_10, %c0_11] : memref<1x384xf32, #tpu.memory_space<vmem>>, vector<1x384xf32>
    %21 = vector.shape_cast %20 : vector<1x384xf32> to vector<384xf32>
    %22 = vector.shape_cast %21 : vector<384xf32> to vector<1x384xf32>
    %23 = vector.broadcast %22 : vector<1x384xf32> to vector<18x384xf32>
    %24 = arith.addf %19, %23 : vector<18x384xf32>
    %25 = vector.shape_cast %24 : vector<18x384xf32> to vector<2x9x384xf32>
    %26 = vector.extract_strided_slice %25 {offsets = [0, 0, 0], sizes = [2, 1, 384], strides = [1, 1, 1]} : vector<2x9x384xf32> to vector<2x1x384xf32>
    %27 = vector.shape_cast %26 : vector<2x1x384xf32> to vector<2x384xf32>
    %c0_12 = arith.constant 0 : index
    %c0_13 = arith.constant 0 : index
    %c0_14 = arith.constant 0 : index
    %28 = vector.load %arg10[%c0_12, %c0_13, %c0_14] : memref<9x2x384xf32, #tpu.memory_space<vmem>>, vector<1x2x384xf32>
    %29 = vector.shape_cast %28 : vector<1x2x384xf32> to vector<2x384xf32>
    %30 = vector.shape_cast %27 : vector<2x384xf32> to vector<1x2x384xf32>
    tpu.vector_store %arg10[%c0_12, %c0_13, %c0_14], %30 {strides = array<i32>} : memref<9x2x384xf32, #tpu.memory_space<vmem>>, vector<1x2x384xf32>,
    %31 = vector.extract_strided_slice %25 {offsets = [0, 1, 0], sizes = [2, 1, 384], strides = [1, 1, 1]} : vector<2x9x384xf32> to vector<2x1x384xf32>
    %32 = vector.shape_cast %31 : vector<2x1x384xf32> to vector<2x384xf32>
    %c1 = arith.constant 1 : index
    %c0_15 = arith.constant 0 : index
    %c0_16 = arith.constant 0 : index
    %33 = vector.load %arg10[%c1, %c0_15, %c0_16] : memref<9x2x384xf32, #tpu.memory_space<vmem>>, vector<1x2x384xf32>
    %34 = vector.shape_cast %33 : vector<1x2x384xf32> to vector<2x384xf32>
    %35 = vector.shape_cast %32 : vector<2x384xf32> to vector<1x2x384xf32>
    tpu.vector_store %arg10[%c1, %c0_15, %c0_16], %35 {strides = array<i32>} : memref<9x2x384xf32, #tpu.memory_space<vmem>>, vector<1x2x384xf32>,
    %36 = vector.extract_strided_slice %25 {offsets = [0, 2, 0], sizes = [2, 1, 384], strides = [1, 1, 1]} : vector<2x9x384xf32> to vector<2x1x384xf32>
    %37 = vector.shape_cast %36 : vector<2x1x384xf32> to vector<2x384xf32>
    %c2 = arith.constant 2 : index
    %c0_17 = arith.constant 0 : index
    %c0_18 = arith.constant 0 : index
    %38 = vector.load %arg10[%c2, %c0_17, %c0_18] : memref<9x2x384xf32, #tpu.memory_space<vmem>>, vector<1x2x384xf32>
    %39 = vector.shape_cast %38 : vector<1x2x384xf32> to vector<2x384xf32>
    %40 = vector.shape_cast %37 : vector<2x384xf32> to vector<1x2x384xf32>
    tpu.vector_store %arg10[%c2, %c0_17, %c0_18], %40 {strides = array<i32>} : memref<9x2x384xf32, #tpu.memory_space<vmem>>, vector<1x2x384xf32>,
    %41 = vector.extract_strided_slice %25 {offsets = [0, 3, 0], sizes = [2, 1, 384], strides = [1, 1, 1]} : vector<2x9x384xf32> to vector<2x1x384xf32>
    %42 = vector.shape_cast %41 : vector<2x1x384xf32> to vector<2x384xf32>
    %c3 = arith.constant 3 : index
    %c0_19 = arith.constant 0 : index
    %c0_20 = arith.constant 0 : index
    %43 = vector.load %arg10[%c3, %c0_19, %c0_20] : memref<9x2x384xf32, #tpu.memory_space<vmem>>, vector<1x2x384xf32>
    %44 = vector.shape_cast %43 : vector<1x2x384xf32> to vector<2x384xf32>
    %45 = vector.shape_cast %42 : vector<2x384xf32> to vector<1x2x384xf32>
    tpu.vector_store %arg10[%c3, %c0_19, %c0_20], %45 {strides = array<i32>} : memref<9x2x384xf32, #tpu.memory_space<vmem>>, vector<1x2x384xf32>,
    %46 = vector.extract_strided_slice %25 {offsets = [0, 4, 0], sizes = [2, 1, 384], strides = [1, 1, 1]} : vector<2x9x384xf32> to vector<2x1x384xf32>
    %47 = vector.shape_cast %46 : vector<2x1x384xf32> to vector<2x384xf32>
    %c4 = arith.constant 4 : index
    %c0_21 = arith.constant 0 : index
    %c0_22 = arith.constant 0 : index
    %48 = vector.load %arg10[%c4, %c0_21, %c0_22] : memref<9x2x384xf32, #tpu.memory_space<vmem>>, vector<1x2x384xf32>
    %49 = vector.shape_cast %48 : vector<1x2x384xf32> to vector<2x384xf32>
    %50 = vector.shape_cast %47 : vector<2x384xf32> to vector<1x2x384xf32>
    tpu.vector_store %arg10[%c4, %c0_21, %c0_22], %50 {strides = array<i32>} : memref<9x2x384xf32, #tpu.memory_space<vmem>>, vector<1x2x384xf32>,
    %51 = vector.extract_strided_slice %25 {offsets = [0, 5, 0], sizes = [2, 1, 384], strides = [1, 1, 1]} : vector<2x9x384xf32> to vector<2x1x384xf32>
    %52 = vector.shape_cast %51 : vector<2x1x384xf32> to vector<2x384xf32>
    %c5 = arith.constant 5 : index
    %c0_23 = arith.constant 0 : index
    %c0_24 = arith.constant 0 : index
    %53 = vector.load %arg10[%c5, %c0_23, %c0_24] : memref<9x2x384xf32, #tpu.memory_space<vmem>>, vector<1x2x384xf32>
    %54 = vector.shape_cast %53 : vector<1x2x384xf32> to vector<2x384xf32>
    %55 = vector.shape_cast %52 : vector<2x384xf32> to vector<1x2x384xf32>
    tpu.vector_store %arg10[%c5, %c0_23, %c0_24], %55 {strides = array<i32>} : memref<9x2x384xf32, #tpu.memory_space<vmem>>, vector<1x2x384xf32>,
    %56 = vector.extract_strided_slice %25 {offsets = [0, 6, 0], sizes = [2, 1, 384], strides = [1, 1, 1]} : vector<2x9x384xf32> to vector<2x1x384xf32>
    %57 = vector.shape_cast %56 : vector<2x1x384xf32> to vector<2x384xf32>
    %c6 = arith.constant 6 : index
    %c0_25 = arith.constant 0 : index
    %c0_26 = arith.constant 0 : index
    %58 = vector.load %arg10[%c6, %c0_25, %c0_26] : memref<9x2x384xf32, #tpu.memory_space<vmem>>, vector<1x2x384xf32>
    %59 = vector.shape_cast %58 : vector<1x2x384xf32> to vector<2x384xf32>
    %60 = vector.shape_cast %57 : vector<2x384xf32> to vector<1x2x384xf32>
    tpu.vector_store %arg10[%c6, %c0_25, %c0_26], %60 {strides = array<i32>} : memref<9x2x384xf32, #tpu.memory_space<vmem>>, vector<1x2x384xf32>,
    %61 = vector.extract_strided_slice %25 {offsets = [0, 7, 0], sizes = [2, 1, 384], strides = [1, 1, 1]} : vector<2x9x384xf32> to vector<2x1x384xf32>
    %62 = vector.shape_cast %61 : vector<2x1x384xf32> to vector<2x384xf32>
    %c7 = arith.constant 7 : index
    %c0_27 = arith.constant 0 : index
    %c0_28 = arith.constant 0 : index
    %63 = vector.load %arg10[%c7, %c0_27, %c0_28] : memref<9x2x384xf32, #tpu.memory_space<vmem>>, vector<1x2x384xf32>
    %64 = vector.shape_cast %63 : vector<1x2x384xf32> to vector<2x384xf32>
    %65 = vector.shape_cast %62 : vector<2x384xf32> to vector<1x2x384xf32>
    tpu.vector_store %arg10[%c7, %c0_27, %c0_28], %65 {strides = array<i32>} : memref<9x2x384xf32, #tpu.memory_space<vmem>>, vector<1x2x384xf32>,
    %66 = vector.extract_strided_slice %25 {offsets = [0, 8, 0], sizes = [2, 1, 384], strides = [1, 1, 1]} : vector<2x9x384xf32> to vector<2x1x384xf32>
    %67 = vector.shape_cast %66 : vector<2x1x384xf32> to vector<2x384xf32>
    %c8 = arith.constant 8 : index
    %c0_29 = arith.constant 0 : index
    %c0_30 = arith.constant 0 : index
    %68 = vector.load %arg10[%c8, %c0_29, %c0_30] : memref<9x2x384xf32, #tpu.memory_space<vmem>>, vector<1x2x384xf32>
    %69 = vector.shape_cast %68 : vector<1x2x384xf32> to vector<2x384xf32>
    %70 = vector.shape_cast %67 : vector<2x384xf32> to vector<1x2x384xf32>
    tpu.vector_store %arg10[%c8, %c0_29, %c0_30], %70 {strides = array<i32>} : memref<9x2x384xf32, #tpu.memory_space<vmem>>, vector<1x2x384xf32>,
    %c0_31 = arith.constant 0 : index
    %c0_32 = arith.constant 0 : index
    %71 = vector.load %arg5[%c0_31, %c0_32] : memref<128x384xbf16, #tpu.memory_space<vmem>>, vector<128x384xbf16>
    %c0_33 = arith.constant 0 : index
    %c0_34 = arith.constant 0 : index
    %72 = vector.load %arg6[%c0_33, %c0_34] : memref<1x384xf32, #tpu.memory_space<vmem>>, vector<1x384xf32>
    %73 = vector.shape_cast %72 : vector<1x384xf32> to vector<1x384xf32>
    %74 = vector.broadcast %73 : vector<1x384xf32> to vector<2x384xf32>
    %cst_35 = arith.constant 0.000000e+00 : f32
    %75 = vector.broadcast %cst_35 : f32 to vector<2x128xf32>
    %c0_36 = arith.constant 0 : index
    %c0_37 = arith.constant 0 : index
    %c0_38 = arith.constant 0 : index
    %76 = vector.load %arg10[%c0_36, %c0_37, %c0_38] : memref<9x2x384xf32, #tpu.memory_space<vmem>>, vector<1x2x384xf32>
    %77 = vector.shape_cast %76 : vector<1x2x384xf32> to vector<2x384xf32>
    %78 = arith.truncf %75 : vector<2x128xf32> to vector<2x128xbf16>
    %cst_39 = arith.constant dense<0.000000e+00> : vector<2x384xf32>
    %79 = tpu.matmul %78, %71, %cst_39 {dimension_numbers = #tpu.dot_dimension_numbers<[1], [0], [0], [1], [0, 0, 1, 1], [], []>} : vector<2x128xbf16>, vector<128x384xbf16>, vector<2x384xf32> -> vector<2x384xf32>
    %80 = arith.addf %79, %74 : vector<2x384xf32>
    %81 = vector.extract_strided_slice %77 {offsets = [0, 0], sizes = [2, 256], strides = [1, 1]} : vector<2x384xf32> to vector<2x256xf32>
    %82 = vector.extract_strided_slice %80 {offsets = [0, 0], sizes = [2, 256], strides = [1, 1]} : vector<2x384xf32> to vector<2x256xf32>
    %83 = arith.addf %81, %82 : vector<2x256xf32>
    %84 = arith.negf %83 : vector<2x256xf32>
    %85 = math.exp %84 : vector<2x256xf32>
    %cst_40 = arith.constant 1.000000e+00 : f32
    %86 = vector.broadcast %cst_40 : f32 to vector<2x256xf32>
    %87 = arith.addf %86, %85 : vector<2x256xf32>
    %88 = arith.divf %86, %87 : vector<2x256xf32>
    %89 = vector.extract_strided_slice %88 {offsets = [0, 0], sizes = [2, 128], strides = [1, 1]} : vector<2x256xf32> to vector<2x128xf32>
    %90 = vector.extract_strided_slice %88 {offsets = [0, 128], sizes = [2, 128], strides = [1, 1]} : vector<2x256xf32> to vector<2x128xf32>
    %91 = vector.extract_strided_slice %77 {offsets = [0, 256], sizes = [2, 128], strides = [1, 1]} : vector<2x384xf32> to vector<2x128xf32>
    %92 = vector.extract_strided_slice %80 {offsets = [0, 256], sizes = [2, 128], strides = [1, 1]} : vector<2x384xf32> to vector<2x128xf32>
    %93 = arith.mulf %89, %92 : vector<2x128xf32>
    %94 = arith.addf %91, %93 : vector<2x128xf32>
    %95 = math.tanh %94 : vector<2x128xf32>
    %cst_41 = arith.constant 1.000000e+00 : f32
    %96 = vector.broadcast %cst_41 : f32 to vector<2x128xf32>
    %97 = arith.subf %96, %90 : vector<2x128xf32>
    %98 = arith.mulf %97, %95 : vector<2x128xf32>
    %99 = arith.mulf %90, %75 : vector<2x128xf32>
    %100 = arith.addf %98, %99 : vector<2x128xf32>
    %c1_42 = arith.constant 1 : index
    %c0_43 = arith.constant 0 : index
    %c0_44 = arith.constant 0 : index
    %101 = vector.load %arg10[%c1_42, %c0_43, %c0_44] : memref<9x2x384xf32, #tpu.memory_space<vmem>>, vector<1x2x384xf32>
    %102 = vector.shape_cast %101 : vector<1x2x384xf32> to vector<2x384xf32>
    %103 = arith.truncf %100 : vector<2x128xf32> to vector<2x128xbf16>
    %cst_45 = arith.constant dense<0.000000e+00> : vector<2x384xf32>
    %104 = tpu.matmul %103, %71, %cst_45 {dimension_numbers = #tpu.dot_dimension_numbers<[1], [0], [0], [1], [0, 0, 1, 1], [], []>} : vector<2x128xbf16>, vector<128x384xbf16>, vector<2x384xf32> -> vector<2x384xf32>
    %105 = arith.addf %104, %74 : vector<2x384xf32>
    %106 = vector.extract_strided_slice %102 {offsets = [0, 0], sizes = [2, 256], strides = [1, 1]} : vector<2x384xf32> to vector<2x256xf32>
    %107 = vector.extract_strided_slice %105 {offsets = [0, 0], sizes = [2, 256], strides = [1, 1]} : vector<2x384xf32> to vector<2x256xf32>
    %108 = arith.addf %106, %107 : vector<2x256xf32>
    %109 = arith.negf %108 : vector<2x256xf32>
    %110 = math.exp %109 : vector<2x256xf32>
    %cst_46 = arith.constant 1.000000e+00 : f32
    %111 = vector.broadcast %cst_46 : f32 to vector<2x256xf32>
    %112 = arith.addf %111, %110 : vector<2x256xf32>
    %113 = arith.divf %111, %112 : vector<2x256xf32>
    %114 = vector.extract_strided_slice %113 {offsets = [0, 0], sizes = [2, 128], strides = [1, 1]} : vector<2x256xf32> to vector<2x128xf32>
    %115 = vector.extract_strided_slice %113 {offsets = [0, 128], sizes = [2, 128], strides = [1, 1]} : vector<2x256xf32> to vector<2x128xf32>
    %116 = vector.extract_strided_slice %102 {offsets = [0, 256], sizes = [2, 128], strides = [1, 1]} : vector<2x384xf32> to vector<2x128xf32>
    %117 = vector.extract_strided_slice %105 {offsets = [0, 256], sizes = [2, 128], strides = [1, 1]} : vector<2x384xf32> to vector<2x128xf32>
    %118 = arith.mulf %114, %117 : vector<2x128xf32>
    %119 = arith.addf %116, %118 : vector<2x128xf32>
    %120 = math.tanh %119 : vector<2x128xf32>
    %cst_47 = arith.constant 1.000000e+00 : f32
    %121 = vector.broadcast %cst_47 : f32 to vector<2x128xf32>
    %122 = arith.subf %121, %115 : vector<2x128xf32>
    %123 = arith.mulf %122, %120 : vector<2x128xf32>
    %124 = arith.mulf %115, %100 : vector<2x128xf32>
    %125 = arith.addf %123, %124 : vector<2x128xf32>
    %c2_48 = arith.constant 2 : index
    %c0_49 = arith.constant 0 : index
    %c0_50 = arith.constant 0 : index
    %126 = vector.load %arg10[%c2_48, %c0_49, %c0_50] : memref<9x2x384xf32, #tpu.memory_space<vmem>>, vector<1x2x384xf32>
    %127 = vector.shape_cast %126 : vector<1x2x384xf32> to vector<2x384xf32>
    %128 = arith.truncf %125 : vector<2x128xf32> to vector<2x128xbf16>
    %cst_51 = arith.constant dense<0.000000e+00> : vector<2x384xf32>
    %129 = tpu.matmul %128, %71, %cst_51 {dimension_numbers = #tpu.dot_dimension_numbers<[1], [0], [0], [1], [0, 0, 1, 1], [], []>} : vector<2x128xbf16>, vector<128x384xbf16>, vector<2x384xf32> -> vector<2x384xf32>
    %130 = arith.addf %129, %74 : vector<2x384xf32>
    %131 = vector.extract_strided_slice %127 {offsets = [0, 0], sizes = [2, 256], strides = [1, 1]} : vector<2x384xf32> to vector<2x256xf32>
    %132 = vector.extract_strided_slice %130 {offsets = [0, 0], sizes = [2, 256], strides = [1, 1]} : vector<2x384xf32> to vector<2x256xf32>
    %133 = arith.addf %131, %132 : vector<2x256xf32>
    %134 = arith.negf %133 : vector<2x256xf32>
    %135 = math.exp %134 : vector<2x256xf32>
    %cst_52 = arith.constant 1.000000e+00 : f32
    %136 = vector.broadcast %cst_52 : f32 to vector<2x256xf32>
    %137 = arith.addf %136, %135 : vector<2x256xf32>
    %138 = arith.divf %136, %137 : vector<2x256xf32>
    %139 = vector.extract_strided_slice %138 {offsets = [0, 0], sizes = [2, 128], strides = [1, 1]} : vector<2x256xf32> to vector<2x128xf32>
    %140 = vector.extract_strided_slice %138 {offsets = [0, 128], sizes = [2, 128], strides = [1, 1]} : vector<2x256xf32> to vector<2x128xf32>
    %141 = vector.extract_strided_slice %127 {offsets = [0, 256], sizes = [2, 128], strides = [1, 1]} : vector<2x384xf32> to vector<2x128xf32>
    %142 = vector.extract_strided_slice %130 {offsets = [0, 256], sizes = [2, 128], strides = [1, 1]} : vector<2x384xf32> to vector<2x128xf32>
    %143 = arith.mulf %139, %142 : vector<2x128xf32>
    %144 = arith.addf %141, %143 : vector<2x128xf32>
    %145 = math.tanh %144 : vector<2x128xf32>
    %cst_53 = arith.constant 1.000000e+00 : f32
    %146 = vector.broadcast %cst_53 : f32 to vector<2x128xf32>
    %147 = arith.subf %146, %140 : vector<2x128xf32>
    %148 = arith.mulf %147, %145 : vector<2x128xf32>
    %149 = arith.mulf %140, %125 : vector<2x128xf32>
    %150 = arith.addf %148, %149 : vector<2x128xf32>
    %c3_54 = arith.constant 3 : index
    %c0_55 = arith.constant 0 : index
    %c0_56 = arith.constant 0 : index
    %151 = vector.load %arg10[%c3_54, %c0_55, %c0_56] : memref<9x2x384xf32, #tpu.memory_space<vmem>>, vector<1x2x384xf32>
    %152 = vector.shape_cast %151 : vector<1x2x384xf32> to vector<2x384xf32>
    %153 = arith.truncf %150 : vector<2x128xf32> to vector<2x128xbf16>
    %cst_57 = arith.constant dense<0.000000e+00> : vector<2x384xf32>
    %154 = tpu.matmul %153, %71, %cst_57 {dimension_numbers = #tpu.dot_dimension_numbers<[1], [0], [0], [1], [0, 0, 1, 1], [], []>} : vector<2x128xbf16>, vector<128x384xbf16>, vector<2x384xf32> -> vector<2x384xf32>
    %155 = arith.addf %154, %74 : vector<2x384xf32>
    %156 = vector.extract_strided_slice %152 {offsets = [0, 0], sizes = [2, 256], strides = [1, 1]} : vector<2x384xf32> to vector<2x256xf32>
    %157 = vector.extract_strided_slice %155 {offsets = [0, 0], sizes = [2, 256], strides = [1, 1]} : vector<2x384xf32> to vector<2x256xf32>
    %158 = arith.addf %156, %157 : vector<2x256xf32>
    %159 = arith.negf %158 : vector<2x256xf32>
    %160 = math.exp %159 : vector<2x256xf32>
    %cst_58 = arith.constant 1.000000e+00 : f32
    %161 = vector.broadcast %cst_58 : f32 to vector<2x256xf32>
    %162 = arith.addf %161, %160 : vector<2x256xf32>
    %163 = arith.divf %161, %162 : vector<2x256xf32>
    %164 = vector.extract_strided_slice %163 {offsets = [0, 0], sizes = [2, 128], strides = [1, 1]} : vector<2x256xf32> to vector<2x128xf32>
    %165 = vector.extract_strided_slice %163 {offsets = [0, 128], sizes = [2, 128], strides = [1, 1]} : vector<2x256xf32> to vector<2x128xf32>
    %166 = vector.extract_strided_slice %152 {offsets = [0, 256], sizes = [2, 128], strides = [1, 1]} : vector<2x384xf32> to vector<2x128xf32>
    %167 = vector.extract_strided_slice %155 {offsets = [0, 256], sizes = [2, 128], strides = [1, 1]} : vector<2x384xf32> to vector<2x128xf32>
    %168 = arith.mulf %164, %167 : vector<2x128xf32>
    %169 = arith.addf %166, %168 : vector<2x128xf32>
    %170 = math.tanh %169 : vector<2x128xf32>
    %cst_59 = arith.constant 1.000000e+00 : f32
    %171 = vector.broadcast %cst_59 : f32 to vector<2x128xf32>
    %172 = arith.subf %171, %165 : vector<2x128xf32>
    %173 = arith.mulf %172, %170 : vector<2x128xf32>
    %174 = arith.mulf %165, %150 : vector<2x128xf32>
    %175 = arith.addf %173, %174 : vector<2x128xf32>
    %c4_60 = arith.constant 4 : index
    %c0_61 = arith.constant 0 : index
    %c0_62 = arith.constant 0 : index
    %176 = vector.load %arg10[%c4_60, %c0_61, %c0_62] : memref<9x2x384xf32, #tpu.memory_space<vmem>>, vector<1x2x384xf32>
    %177 = vector.shape_cast %176 : vector<1x2x384xf32> to vector<2x384xf32>
    %178 = arith.truncf %175 : vector<2x128xf32> to vector<2x128xbf16>
    %cst_63 = arith.constant dense<0.000000e+00> : vector<2x384xf32>
    %179 = tpu.matmul %178, %71, %cst_63 {dimension_numbers = #tpu.dot_dimension_numbers<[1], [0], [0], [1], [0, 0, 1, 1], [], []>} : vector<2x128xbf16>, vector<128x384xbf16>, vector<2x384xf32> -> vector<2x384xf32>
    %180 = arith.addf %179, %74 : vector<2x384xf32>
    %181 = vector.extract_strided_slice %177 {offsets = [0, 0], sizes = [2, 256], strides = [1, 1]} : vector<2x384xf32> to vector<2x256xf32>
    %182 = vector.extract_strided_slice %180 {offsets = [0, 0], sizes = [2, 256], strides = [1, 1]} : vector<2x384xf32> to vector<2x256xf32>
    %183 = arith.addf %181, %182 : vector<2x256xf32>
    %184 = arith.negf %183 : vector<2x256xf32>
    %185 = math.exp %184 : vector<2x256xf32>
    %cst_64 = arith.constant 1.000000e+00 : f32
    %186 = vector.broadcast %cst_64 : f32 to vector<2x256xf32>
    %187 = arith.addf %186, %185 : vector<2x256xf32>
    %188 = arith.divf %186, %187 : vector<2x256xf32>
    %189 = vector.extract_strided_slice %188 {offsets = [0, 0], sizes = [2, 128], strides = [1, 1]} : vector<2x256xf32> to vector<2x128xf32>
    %190 = vector.extract_strided_slice %188 {offsets = [0, 128], sizes = [2, 128], strides = [1, 1]} : vector<2x256xf32> to vector<2x128xf32>
    %191 = vector.extract_strided_slice %177 {offsets = [0, 256], sizes = [2, 128], strides = [1, 1]} : vector<2x384xf32> to vector<2x128xf32>
    %192 = vector.extract_strided_slice %180 {offsets = [0, 256], sizes = [2, 128], strides = [1, 1]} : vector<2x384xf32> to vector<2x128xf32>
    %193 = arith.mulf %189, %192 : vector<2x128xf32>
    %194 = arith.addf %191, %193 : vector<2x128xf32>
    %195 = math.tanh %194 : vector<2x128xf32>
    %cst_65 = arith.constant 1.000000e+00 : f32
    %196 = vector.broadcast %cst_65 : f32 to vector<2x128xf32>
    %197 = arith.subf %196, %190 : vector<2x128xf32>
    %198 = arith.mulf %197, %195 : vector<2x128xf32>
    %199 = arith.mulf %190, %175 : vector<2x128xf32>
    %200 = arith.addf %198, %199 : vector<2x128xf32>
    %c5_66 = arith.constant 5 : index
    %c0_67 = arith.constant 0 : index
    %c0_68 = arith.constant 0 : index
    %201 = vector.load %arg10[%c5_66, %c0_67, %c0_68] : memref<9x2x384xf32, #tpu.memory_space<vmem>>, vector<1x2x384xf32>
    %202 = vector.shape_cast %201 : vector<1x2x384xf32> to vector<2x384xf32>
    %203 = arith.truncf %200 : vector<2x128xf32> to vector<2x128xbf16>
    %cst_69 = arith.constant dense<0.000000e+00> : vector<2x384xf32>
    %204 = tpu.matmul %203, %71, %cst_69 {dimension_numbers = #tpu.dot_dimension_numbers<[1], [0], [0], [1], [0, 0, 1, 1], [], []>} : vector<2x128xbf16>, vector<128x384xbf16>, vector<2x384xf32> -> vector<2x384xf32>
    %205 = arith.addf %204, %74 : vector<2x384xf32>
    %206 = vector.extract_strided_slice %202 {offsets = [0, 0], sizes = [2, 256], strides = [1, 1]} : vector<2x384xf32> to vector<2x256xf32>
    %207 = vector.extract_strided_slice %205 {offsets = [0, 0], sizes = [2, 256], strides = [1, 1]} : vector<2x384xf32> to vector<2x256xf32>
    %208 = arith.addf %206, %207 : vector<2x256xf32>
    %209 = arith.negf %208 : vector<2x256xf32>
    %210 = math.exp %209 : vector<2x256xf32>
    %cst_70 = arith.constant 1.000000e+00 : f32
    %211 = vector.broadcast %cst_70 : f32 to vector<2x256xf32>
    %212 = arith.addf %211, %210 : vector<2x256xf32>
    %213 = arith.divf %211, %212 : vector<2x256xf32>
    %214 = vector.extract_strided_slice %213 {offsets = [0, 0], sizes = [2, 128], strides = [1, 1]} : vector<2x256xf32> to vector<2x128xf32>
    %215 = vector.extract_strided_slice %213 {offsets = [0, 128], sizes = [2, 128], strides = [1, 1]} : vector<2x256xf32> to vector<2x128xf32>
    %216 = vector.extract_strided_slice %202 {offsets = [0, 256], sizes = [2, 128], strides = [1, 1]} : vector<2x384xf32> to vector<2x128xf32>
    %217 = vector.extract_strided_slice %205 {offsets = [0, 256], sizes = [2, 128], strides = [1, 1]} : vector<2x384xf32> to vector<2x128xf32>
    %218 = arith.mulf %214, %217 : vector<2x128xf32>
    %219 = arith.addf %216, %218 : vector<2x128xf32>
    %220 = math.tanh %219 : vector<2x128xf32>
    %cst_71 = arith.constant 1.000000e+00 : f32
    %221 = vector.broadcast %cst_71 : f32 to vector<2x128xf32>
    %222 = arith.subf %221, %215 : vector<2x128xf32>
    %223 = arith.mulf %222, %220 : vector<2x128xf32>
    %224 = arith.mulf %215, %200 : vector<2x128xf32>
    %225 = arith.addf %223, %224 : vector<2x128xf32>
    %c6_72 = arith.constant 6 : index
    %c0_73 = arith.constant 0 : index
    %c0_74 = arith.constant 0 : index
    %226 = vector.load %arg10[%c6_72, %c0_73, %c0_74] : memref<9x2x384xf32, #tpu.memory_space<vmem>>, vector<1x2x384xf32>
    %227 = vector.shape_cast %226 : vector<1x2x384xf32> to vector<2x384xf32>
    %228 = arith.truncf %225 : vector<2x128xf32> to vector<2x128xbf16>
    %cst_75 = arith.constant dense<0.000000e+00> : vector<2x384xf32>
    %229 = tpu.matmul %228, %71, %cst_75 {dimension_numbers = #tpu.dot_dimension_numbers<[1], [0], [0], [1], [0, 0, 1, 1], [], []>} : vector<2x128xbf16>, vector<128x384xbf16>, vector<2x384xf32> -> vector<2x384xf32>
    %230 = arith.addf %229, %74 : vector<2x384xf32>
    %231 = vector.extract_strided_slice %227 {offsets = [0, 0], sizes = [2, 256], strides = [1, 1]} : vector<2x384xf32> to vector<2x256xf32>
    %232 = vector.extract_strided_slice %230 {offsets = [0, 0], sizes = [2, 256], strides = [1, 1]} : vector<2x384xf32> to vector<2x256xf32>
    %233 = arith.addf %231, %232 : vector<2x256xf32>
    %234 = arith.negf %233 : vector<2x256xf32>
    %235 = math.exp %234 : vector<2x256xf32>
    %cst_76 = arith.constant 1.000000e+00 : f32
    %236 = vector.broadcast %cst_76 : f32 to vector<2x256xf32>
    %237 = arith.addf %236, %235 : vector<2x256xf32>
    %238 = arith.divf %236, %237 : vector<2x256xf32>
    %239 = vector.extract_strided_slice %238 {offsets = [0, 0], sizes = [2, 128], strides = [1, 1]} : vector<2x256xf32> to vector<2x128xf32>
    %240 = vector.extract_strided_slice %238 {offsets = [0, 128], sizes = [2, 128], strides = [1, 1]} : vector<2x256xf32> to vector<2x128xf32>
    %241 = vector.extract_strided_slice %227 {offsets = [0, 256], sizes = [2, 128], strides = [1, 1]} : vector<2x384xf32> to vector<2x128xf32>
    %242 = vector.extract_strided_slice %230 {offsets = [0, 256], sizes = [2, 128], strides = [1, 1]} : vector<2x384xf32> to vector<2x128xf32>
    %243 = arith.mulf %239, %242 : vector<2x128xf32>
    %244 = arith.addf %241, %243 : vector<2x128xf32>
    %245 = math.tanh %244 : vector<2x128xf32>
    %cst_77 = arith.constant 1.000000e+00 : f32
    %246 = vector.broadcast %cst_77 : f32 to vector<2x128xf32>
    %247 = arith.subf %246, %240 : vector<2x128xf32>
    %248 = arith.mulf %247, %245 : vector<2x128xf32>
    %249 = arith.mulf %240, %225 : vector<2x128xf32>
    %250 = arith.addf %248, %249 : vector<2x128xf32>
    %c7_78 = arith.constant 7 : index
    %c0_79 = arith.constant 0 : index
    %c0_80 = arith.constant 0 : index
    %251 = vector.load %arg10[%c7_78, %c0_79, %c0_80] : memref<9x2x384xf32, #tpu.memory_space<vmem>>, vector<1x2x384xf32>
    %252 = vector.shape_cast %251 : vector<1x2x384xf32> to vector<2x384xf32>
    %253 = arith.truncf %250 : vector<2x128xf32> to vector<2x128xbf16>
    %cst_81 = arith.constant dense<0.000000e+00> : vector<2x384xf32>
    %254 = tpu.matmul %253, %71, %cst_81 {dimension_numbers = #tpu.dot_dimension_numbers<[1], [0], [0], [1], [0, 0, 1, 1], [], []>} : vector<2x128xbf16>, vector<128x384xbf16>, vector<2x384xf32> -> vector<2x384xf32>
    %255 = arith.addf %254, %74 : vector<2x384xf32>
    %256 = vector.extract_strided_slice %252 {offsets = [0, 0], sizes = [2, 256], strides = [1, 1]} : vector<2x384xf32> to vector<2x256xf32>
    %257 = vector.extract_strided_slice %255 {offsets = [0, 0], sizes = [2, 256], strides = [1, 1]} : vector<2x384xf32> to vector<2x256xf32>
    %258 = arith.addf %256, %257 : vector<2x256xf32>
    %259 = arith.negf %258 : vector<2x256xf32>
    %260 = math.exp %259 : vector<2x256xf32>
    %cst_82 = arith.constant 1.000000e+00 : f32
    %261 = vector.broadcast %cst_82 : f32 to vector<2x256xf32>
    %262 = arith.addf %261, %260 : vector<2x256xf32>
    %263 = arith.divf %261, %262 : vector<2x256xf32>
    %264 = vector.extract_strided_slice %263 {offsets = [0, 0], sizes = [2, 128], strides = [1, 1]} : vector<2x256xf32> to vector<2x128xf32>
    %265 = vector.extract_strided_slice %263 {offsets = [0, 128], sizes = [2, 128], strides = [1, 1]} : vector<2x256xf32> to vector<2x128xf32>
    %266 = vector.extract_strided_slice %252 {offsets = [0, 256], sizes = [2, 128], strides = [1, 1]} : vector<2x384xf32> to vector<2x128xf32>
    %267 = vector.extract_strided_slice %255 {offsets = [0, 256], sizes = [2, 128], strides = [1, 1]} : vector<2x384xf32> to vector<2x128xf32>
    %268 = arith.mulf %264, %267 : vector<2x128xf32>
    %269 = arith.addf %266, %268 : vector<2x128xf32>
    %270 = math.tanh %269 : vector<2x128xf32>
    %cst_83 = arith.constant 1.000000e+00 : f32
    %271 = vector.broadcast %cst_83 : f32 to vector<2x128xf32>
    %272 = arith.subf %271, %265 : vector<2x128xf32>
    %273 = arith.mulf %272, %270 : vector<2x128xf32>
    %274 = arith.mulf %265, %250 : vector<2x128xf32>
    %275 = arith.addf %273, %274 : vector<2x128xf32>
    %c8_84 = arith.constant 8 : index
    %c0_85 = arith.constant 0 : index
    %c0_86 = arith.constant 0 : index
    %276 = vector.load %arg10[%c8_84, %c0_85, %c0_86] : memref<9x2x384xf32, #tpu.memory_space<vmem>>, vector<1x2x384xf32>
    %277 = vector.shape_cast %276 : vector<1x2x384xf32> to vector<2x384xf32>
    %278 = arith.truncf %275 : vector<2x128xf32> to vector<2x128xbf16>
    %cst_87 = arith.constant dense<0.000000e+00> : vector<2x384xf32>
    %279 = tpu.matmul %278, %71, %cst_87 {dimension_numbers = #tpu.dot_dimension_numbers<[1], [0], [0], [1], [0, 0, 1, 1], [], []>} : vector<2x128xbf16>, vector<128x384xbf16>, vector<2x384xf32> -> vector<2x384xf32>
    %280 = arith.addf %279, %74 : vector<2x384xf32>
    %281 = vector.extract_strided_slice %277 {offsets = [0, 0], sizes = [2, 256], strides = [1, 1]} : vector<2x384xf32> to vector<2x256xf32>
    %282 = vector.extract_strided_slice %280 {offsets = [0, 0], sizes = [2, 256], strides = [1, 1]} : vector<2x384xf32> to vector<2x256xf32>
    %283 = arith.addf %281, %282 : vector<2x256xf32>
    %284 = arith.negf %283 : vector<2x256xf32>
    %285 = math.exp %284 : vector<2x256xf32>
    %cst_88 = arith.constant 1.000000e+00 : f32
    %286 = vector.broadcast %cst_88 : f32 to vector<2x256xf32>
    %287 = arith.addf %286, %285 : vector<2x256xf32>
    %288 = arith.divf %286, %287 : vector<2x256xf32>
    %289 = vector.extract_strided_slice %288 {offsets = [0, 0], sizes = [2, 128], strides = [1, 1]} : vector<2x256xf32> to vector<2x128xf32>
    %290 = vector.extract_strided_slice %288 {offsets = [0, 128], sizes = [2, 128], strides = [1, 1]} : vector<2x256xf32> to vector<2x128xf32>
    %291 = vector.extract_strided_slice %277 {offsets = [0, 256], sizes = [2, 128], strides = [1, 1]} : vector<2x384xf32> to vector<2x128xf32>
    %292 = vector.extract_strided_slice %280 {offsets = [0, 256], sizes = [2, 128], strides = [1, 1]} : vector<2x384xf32> to vector<2x128xf32>
    %293 = arith.mulf %289, %292 : vector<2x128xf32>
    %294 = arith.addf %291, %293 : vector<2x128xf32>
    %295 = math.tanh %294 : vector<2x128xf32>
    %cst_89 = arith.constant 1.000000e+00 : f32
    %296 = vector.broadcast %cst_89 : f32 to vector<2x128xf32>
    %297 = arith.subf %296, %290 : vector<2x128xf32>
    %298 = arith.mulf %297, %295 : vector<2x128xf32>
    %299 = arith.mulf %290, %275 : vector<2x128xf32>
    %300 = arith.addf %298, %299 : vector<2x128xf32>
    %301 = arith.truncf %300 : vector<2x128xf32> to vector<2x128xbf16>
    %c0_90 = arith.constant 0 : index
    %c0_91 = arith.constant 0 : index
    %302 = vector.load %arg7[%c0_90, %c0_91] : memref<128x1xbf16, #tpu.memory_space<vmem>>, vector<128x1xbf16>
    %cst_92 = arith.constant dense<0.000000e+00> : vector<2x1xf32>
    %303 = tpu.matmul %301, %302, %cst_92 {dimension_numbers = #tpu.dot_dimension_numbers<[1], [0], [0], [1], [0, 0, 1, 1], [], []>} : vector<2x128xbf16>, vector<128x1xbf16>, vector<2x1xf32> -> vector<2x1xf32>
    %c0_93 = arith.constant 0 : index
    %c0_94 = arith.constant 0 : index
    %304 = vector.load %arg8[%c0_93, %c0_94] : memref<1x1xf32, #tpu.memory_space<vmem>>, vector<1x1xf32>
    %305 = vector.shape_cast %304 : vector<1x1xf32> to vector<1xf32>
    %306 = vector.shape_cast %305 : vector<1xf32> to vector<1x1xf32>
    %307 = vector.broadcast %306 : vector<1x1xf32> to vector<2x1xf32>
    %308 = arith.addf %303, %307 : vector<2x1xf32>
    %309 = arith.negf %308 : vector<2x1xf32>
    %310 = math.exp %309 : vector<2x1xf32>
    %cst_95 = arith.constant 1.000000e+00 : f32
    %311 = vector.broadcast %cst_95 : f32 to vector<2x1xf32>
    %312 = arith.addf %311, %310 : vector<2x1xf32>
    %313 = arith.divf %311, %312 : vector<2x1xf32>
    %c0_96 = arith.constant 0 : index
    %c0_97 = arith.constant 0 : index
    %314 = vector.load %arg9[%c0_96, %c0_97] : memref<2x1xf32, #tpu.memory_space<vmem>>, vector<2x1xf32>
    tpu.vector_store %arg9[%c0_96, %c0_97], %313 {strides = array<i32>} : memref<2x1xf32, #tpu.memory_space<vmem>>, vector<2x1xf32>,
    return
  }
}

</mosaic_0001>

<llo_original>
// kernel: tpu_custom_call.1
$region0: #{tpu_custom_call.1}
  #allocation0 [shape = 'u32[]', space=smem, size = 0x4, offset = 0x4, fixed_abs, tag = 'smem constant byte address 0x4 - core index']
  #allocation1 [shape = 'u32[72,128]{1,0:T(1,128)}', space=vmem, size = 0x9000, scoped, tag = 'internal scratch']
  #allocation2 [shape = 'f32[9,2,384]{2,1,0:T(2,128)}', space=vmem, size = 0x6c00, scoped, tag = 'scratch operand']
  #allocation3 [shape = 'f32[1,1]{1,0:T(1,128)S(1)}', space=vmem, size = 0x200, scoped, tag = 'scoped memory for tpu_custom_call.1']
  %s0 = inlined_call_operand.vmem [shape: f32[2,12,30], index: 0, kind: input, shape index: {}]
  %s1 = inlined_call_operand.vmem [shape: bf16[120,256], index: 1, kind: input, shape index: {}]
  %s2 = inlined_call_operand.hbm [shape: f32[1,256], index: 2, kind: input, shape index: {}]
  %s3 = inlined_call_operand.hbm [shape: bf16[256,384], index: 3, kind: input, shape index: {}]
  %s4 = inlined_call_operand.vmem [shape: f32[1,384], index: 4, kind: input, shape index: {}]
  %s5 = inlined_call_operand.hbm [shape: bf16[128,384], index: 5, kind: input, shape index: {}]
  %s6 = inlined_call_operand.vmem [shape: f32[1,384], index: 6, kind: input, shape index: {}]
  %s7 = inlined_call_operand.vmem [shape: bf16[128,1], index: 7, kind: input, shape index: {}]
  %s8 = inlined_call_operand.<no memory space> [shape: f32[1,1], index: 8, kind: input, shape index: {}]
  %s9 = inlined_call_operand.vmem [shape: f32[2,1], index: 9, kind: output, shape index: {}]
  %s10 = sld [smem:[#allocation0]]
  $region58: #{tpu_custom_call.1} parent=0
    _
  %s12 = ssub.s32 1, %s10
  %s13 = scalar_select 0, %s12, %s10
  %v14 = vstv %s8
  %15 = vst [vmem:[#allocation3] sm:$0x1] %v14
  $region1: #{tpu_custom_call.1} parent=0
    #allocation4 [shape = 'u8[1024]{0}', space=vmem, size = 0x400, scoped, tag = 'input window, operand 2, single buffered']
    #allocation5 [shape = 's32[1]{0}', space=sflag, size = 0x4, scoped, tag = 'scoped memory for tpu_custom_call.1']
    #allocation6 [shape = 'u8[196608]{0}', space=vmem, size = 0x30000, scoped, tag = 'input window, operand 3, single buffered']
    #allocation7 [shape = 's32[1]{0}', space=sflag, size = 0x4, scoped, tag = 'scoped memory for tpu_custom_call.1']
    #allocation8 [shape = 'u8[98304]{0}', space=vmem, size = 0x18000, scoped, tag = 'input window, operand 5, single buffered']
    %16 = vsyncpa [#allocation5], 0
    %17 = vsyncpa [#allocation7], 0
    // Predicated region
    $region2: #{tpu_custom_call.1} parent=1 // pred_check
      _
    $region3: #{tpu_custom_call.1} parent=1 // pred_check_branch
      %19 = sbr.rel (0) target = $region5
    $region4: #{tpu_custom_call.1} parent=1 // pred_region
      _
    $region5: #{tpu_custom_call.1} parent=1 // pred_fallthru
      _
    // Predicated region
    $region6: #{tpu_custom_call.1} parent=1 // pred_check
      _
    $region7: #{tpu_custom_call.1} parent=1 // pred_check_branch
      %21 = sbr.rel (0) target = $region9
    $region8: #{tpu_custom_call.1} parent=1 // pred_region
      _
    $region9: #{tpu_custom_call.1} parent=1 // pred_fallthru
      _
    // Predicated region
    $region10: #{tpu_custom_call.1} parent=1 // pred_check
      _
    $region11: #{tpu_custom_call.1} parent=1 // pred_check_branch
      %23 = sbr.rel (0) target = $region13
    $region12: #{tpu_custom_call.1} parent=1 // pred_region
      %25 = vsyncadd [#allocation5], 0
      %s27 = sshll.u32 %s2, 4
      %s28 = int_to_ptr.hbm [resolvable:$true] %s27
      %s29 = sshll.u32 [#allocation4], 4
      %s30 = int_to_ptr.vmem [resolvable:$true] %s29
      %32 = dma.hbm_to_vmem [thread:$0]  %s28, 32, %s30, [#allocation5]
    $region13: #{tpu_custom_call.1} parent=1 // pred_fallthru
      _
    // Predicated region
    $region14: #{tpu_custom_call.1} parent=1 // pred_check
      _
    $region15: #{tpu_custom_call.1} parent=1 // pred_check_branch
      %34 = sbr.rel (0) target = $region17
    $region16: #{tpu_custom_call.1} parent=1 // pred_region
      %36 = vsyncadd [#allocation7], 0
      %s37 = sshll.u32 %s3, 4
      %s38 = int_to_ptr.hbm [resolvable:$true] %s37
      %s39 = sshll.u32 [#allocation6], 4
      %s40 = int_to_ptr.vmem [resolvable:$true] %s39
      %45 = dma.hbm_to_vmem [thread:$0]  %s38, 6144, %s40, [#allocation7], 192, 192, 12
    $region17: #{tpu_custom_call.1} parent=1 // pred_fallthru
      _
    // Predicated region
    $region18: #{tpu_custom_call.1} parent=1 // pred_check
      _
    $region19: #{tpu_custom_call.1} parent=1 // pred_check_branch
      %47 = sbr.rel (0) target = $region21
    $region20: #{tpu_custom_call.1} parent=1 // pred_region
      _
    $region21: #{tpu_custom_call.1} parent=1 // pred_fallthru
      _
    // Predicated region
    $region22: #{tpu_custom_call.1} parent=1 // pred_check
      _
    $region23: #{tpu_custom_call.1} parent=1 // pred_check_branch
      %49 = sbr.rel (0) target = $region25
    $region24: #{tpu_custom_call.1} parent=1 // pred_region
      %51 = vsyncadd [#allocation7], 0
      %s52 = sshll.u32 %s5, 4
      %s53 = int_to_ptr.hbm [resolvable:$true] %s52
      %s54 = sshll.u32 [#allocation8], 4
      %s55 = int_to_ptr.vmem [resolvable:$true] %s54
      %60 = dma.hbm_to_vmem [thread:$0]  %s53, 3072, %s55, [#allocation7], 192, 192, 12
    $region25: #{tpu_custom_call.1} parent=1 // pred_fallthru
      _
    // Predicated region
    $region26: #{tpu_custom_call.1} parent=1 // pred_check
      _
    $region27: #{tpu_custom_call.1} parent=1 // pred_check_branch
      %62 = sbr.rel (0) target = $region29
    $region28: #{tpu_custom_call.1} parent=1 // pred_region
      _
    $region29: #{tpu_custom_call.1} parent=1 // pred_fallthru
      _
    // Predicated region
    $region30: #{tpu_custom_call.1} parent=1 // pred_check
      _
    $region31: #{tpu_custom_call.1} parent=1 // pred_check_branch
      %64 = sbr.rel (0) target = $region33
    $region32: #{tpu_custom_call.1} parent=1 // pred_region
      _
    $region33: #{tpu_custom_call.1} parent=1 // pred_fallthru
      _
    // Predicated region
    $region34: #{tpu_custom_call.1} parent=1 // pred_check
      _
    $region35: #{tpu_custom_call.1} parent=1 // pred_check_branch
      %66 = sbr.rel (0) target = $region37
    $region36: #{tpu_custom_call.1} parent=1 // pred_region
      _
    $region37: #{tpu_custom_call.1} parent=1 // pred_fallthru
      _
    // Predicated region
    $region38: #{tpu_custom_call.1} parent=1 // pred_check
      _
    $region39: #{tpu_custom_call.1} parent=1 // pred_check_branch
      %68 = sbr.rel (0) target = $region41
    $region40: #{tpu_custom_call.1} parent=1 // pred_region
      %70 = dma.done [#allocation5], 32
    $region41: #{tpu_custom_call.1} parent=1 // pred_fallthru
      _
    // Predicated region
    $region42: #{tpu_custom_call.1} parent=1 // pred_check
      _
    $region43: #{tpu_custom_call.1} parent=1 // pred_check_branch
      %72 = sbr.rel (0) target = $region45
    $region44: #{tpu_custom_call.1} parent=1 // pred_region
      %74 = dma.done [#allocation7], 6144
    $region45: #{tpu_custom_call.1} parent=1 // pred_fallthru
      _
    // Predicated region
    $region46: #{tpu_custom_call.1} parent=1 // pred_check
      _
    $region47: #{tpu_custom_call.1} parent=1 // pred_check_branch
      %76 = sbr.rel (0) target = $region49
    $region48: #{tpu_custom_call.1} parent=1 // pred_region
      %78 = dma.done [#allocation7], 3072
    $region49: #{tpu_custom_call.1} parent=1 // pred_fallthru
      _
    %v80 = vld [vmem:[%s0] sm:$0xff]
    %v81 = vld [vmem:[%s0 + $0x8] sm:$0xf]
    %v82 = vld [vmem:[%s0 + $0x10] sm:$0xff]
    %v83 = vld [vmem:[%s0 + $0x18] sm:$0xf]
    %vm88 = vcmask 1046528
    %v89 = vrot.slane %v80, 1
    %v90 = vrot.slane %v81, 1
    %v91 = vsel %vm88, %v89, %v90
    %v92 = vrot.slane %v82, 1
    %v93 = vrot.slane %v83, 1
    %v94 = vsel %vm88, %v92, %v93
    %95 = vrot.lane.b32.xlu0 %v91, 30
    %v96 = vpop.permute.xlu0 %95
    %97 = vrot.lane.b32.xlu0 %v90, 30
    %v98 = vpop.permute.xlu0 %97
    %99 = vrot.lane.b32.xlu0 %v94, 30
    %v100 = vpop.permute.xlu0 %99
    %101 = vrot.lane.b32.xlu0 %v93, 30
    %v102 = vpop.permute.xlu0 %101
    %vm107 = vcmask 1045504
    %v108 = vrot.slane %v80, 2
    %v109 = vrot.slane %v81, 2
    %v110 = vsel %vm107, %v108, %v109
    %v111 = vrot.slane %v82, 2
    %v112 = vrot.slane %v83, 2
    %v113 = vsel %vm107, %v111, %v112
    %114 = vrot.lane.b32.xlu0 %v110, 60
    %v115 = vpop.permute.xlu0 %114
    %116 = vrot.lane.b32.xlu0 %v109, 60
    %v117 = vpop.permute.xlu0 %116
    %118 = vrot.lane.b32.xlu0 %v113, 60
    %v119 = vpop.permute.xlu0 %118
    %120 = vrot.lane.b32.xlu0 %v112, 60
    %v121 = vpop.permute.xlu0 %120
    %vm126 = vcmask 1044480
    %v127 = vrot.slane %v80, 3
    %v128 = vrot.slane %v81, 3
    %v129 = vsel %vm126, %v127, %v128
    %v130 = vrot.slane %v82, 3
    %v131 = vrot.slane %v83, 3
    %v132 = vsel %vm126, %v130, %v131
    %133 = vrot.lane.b32.xlu0 %v129, 90
    %v134 = vpop.permute.xlu0 %133
    %135 = vrot.lane.b32.xlu0 %v128, 90
    %v136 = vpop.permute.xlu0 %135
    %137 = vrot.lane.b32.xlu0 %v132, 90
    %v138 = vpop.permute.xlu0 %137
    %139 = vrot.lane.b32.xlu0 %v131, 90
    %v140 = vpop.permute.xlu0 %139
    %vm145 = vcmask 244736
    %v146 = vsel %vm145, %v80, %v96
    %v147 = vsel %vm145, %v81, %v98
    %v148 = vsel %vm145, %v82, %v100
    %v149 = vsel %vm145, %v83, %v102
    %vm150 = vcmask 490496
    %v151 = vsel %vm150, %v146, %v115
    %v152 = vsel %vm150, %v147, %v117
    %v153 = vsel %vm150, %v148, %v119
    %v154 = vsel %vm150, %v149, %v121
    %vm155 = vcmask 736256
    %v156 = vsel %vm155, %v151, %v134
    %v157 = vsel %vm155, %v152, %v136
    %v158 = vsel %vm155, %v153, %v138
    %v159 = vsel %vm155, %v154, %v140
    %v164 = vrot.slane %v156, 1
    %v165 = vrot.slane %v156, 2
    %v166 = vrot.slane %v156, 3
    %v167 = vrot.slane %v156, 4
    %v168 = vrot.slane %v156, 5
    %v169 = vrot.slane %v156, 6
    %v170 = vrot.slane %v156, 7
    %v171 = vrot.slane %v158, 1
    %v172 = vrot.slane %v158, 2
    %v173 = vrot.slane %v158, 3
    %v174 = vrot.slane %v158, 4
    %v175 = vrot.slane %v158, 5
    %v176 = vrot.slane %v158, 6
    %v177 = vrot.slane %v158, 7
    %178 = vst [vmem:[#allocation1] ss:$9 sm:$0xff] %v156
    %s179 = scalar_lea.vmem [#allocation1], 1
    %180 = vst [vmem:[%s179] ss:$9 sm:$0xff] %v164
    %s181 = scalar_lea.vmem [#allocation1], 2
    %182 = vst [vmem:[%s181] ss:$9 sm:$0xff] %v165
    %s183 = scalar_lea.vmem [#allocation1], 3
    %184 = vst [vmem:[%s183] ss:$9 sm:$0xff] %v166
    %s185 = scalar_lea.vmem [#allocation1], 4
    %186 = vst [vmem:[%s185] ss:$9 sm:$0xff] %v167
    %s187 = scalar_lea.vmem [#allocation1], 5
    %188 = vst [vmem:[%s187] ss:$9 sm:$0xff] %v168
    %s189 = scalar_lea.vmem [#allocation1], 6
    %190 = vst [vmem:[%s189] ss:$9 sm:$0xff] %v169
    %s191 = scalar_lea.vmem [#allocation1], 7
    %192 = vst [vmem:[%s191] ss:$9 sm:$0xff] %v170
    %v193 = vld [vmem:[#allocation1] sm:$0xff]
    %194 = vst [vmem:[#allocation1] ss:$9 sm:$0xff] %v157
    %195 = vst [vmem:[%s179] ss:$9 sm:$0xff] %v158
    %196 = vst [vmem:[%s181] ss:$9 sm:$0xff] %v171
    %197 = vst [vmem:[%s183] ss:$9 sm:$0xff] %v172
    %198 = vst [vmem:[%s185] ss:$9 sm:$0xff] %v173
    %199 = vst [vmem:[%s187] ss:$9 sm:$0xff] %v174
    %200 = vst [vmem:[%s189] ss:$9 sm:$0xff] %v175
    %201 = vst [vmem:[%s191] ss:$9 sm:$0xff] %v176
    %v202 = vld [vmem:[#allocation1] sm:$0xff]
    %203 = vst [vmem:[#allocation1] ss:$9 sm:$0xff] %v177
    %204 = vst [vmem:[%s179] ss:$9 sm:$0xff] %v159
    %v205 = vld [vmem:[#allocation1] sm:$0xff]
    %v209 = vpack.c.bf16 %v202, %v193
    %v210 = vpack.c.bf16 %v205, %v205
    %v211 = vld [vmem:[%s1] sm:$0xff]
    %v212 = vld [vmem:[%s1 + $0x8] sm:$0xff]
    %v213 = vld [vmem:[%s1 + $0x10] sm:$0xff]
    %v214 = vld [vmem:[%s1 + $0x18] sm:$0xff]
    %v215 = vld [vmem:[%s1 + $0x20] sm:$0xff]
    %v216 = vld [vmem:[%s1 + $0x28] sm:$0xff]
    %v217 = vld [vmem:[%s1 + $0x30] sm:$0xff]
    %v218 = vld [vmem:[%s1 + $0x38] sm:$0xff]
    %v219 = vld [vmem:[%s1 + $0x40] sm:$0xff]
    %v220 = vld [vmem:[%s1 + $0x48] sm:$0xff]
    %v221 = vld [vmem:[%s1 + $0x50] sm:$0xff]
    %v222 = vld [vmem:[%s1 + $0x58] sm:$0xff]
    %v223 = vld [vmem:[%s1 + $0x60] sm:$0xff]
    %v224 = vld [vmem:[%s1 + $0x68] sm:$0xff]
    %v225 = vld [vmem:[%s1 + $0x70] sm:$0xff]
    %v226 = vld [vmem:[#allocation4] sm:$0x3]
    %v228 = vperm.slane %v226, 0
    %v229 = vperm.slane %v226, 1
    %v247 = vunpack.c.l.b16 %v211
    %v248 = vunpack.c.h.b16 %v211
    %v249 = vunpack.c.l.b16 %v212
    %v250 = vunpack.c.h.b16 %v212
    %v251 = vunpack.c.l.b16 %v213
    %v252 = vunpack.c.h.b16 %v213
    %v253 = vunpack.c.l.b16 %v214
    %v254 = vunpack.c.h.b16 %v214
    %v255 = vunpack.c.l.b16 %v215
    %v256 = vunpack.c.h.b16 %v215
    %v257 = vunpack.c.l.b16 %v216
    %v258 = vunpack.c.h.b16 %v216
    %v259 = vunpack.c.l.b16 %v217
    %v260 = vunpack.c.h.b16 %v217
    %v261 = vunpack.c.l.b16 %v218
    %v262 = vunpack.c.h.b16 %v218
    %v263 = vunpack.c.l.b16 %v219
    %v264 = vunpack.c.h.b16 %v219
    %v265 = vunpack.c.l.b16 %v220
    %v266 = vunpack.c.h.b16 %v220
    %v267 = vunpack.c.l.b16 %v221
    %v268 = vunpack.c.h.b16 %v221
    %v269 = vunpack.c.l.b16 %v222
    %v270 = vunpack.c.h.b16 %v222
    %v271 = vunpack.c.l.b16 %v223
    %v272 = vunpack.c.h.b16 %v223
    %v273 = vunpack.c.l.b16 %v224
    %v274 = vunpack.c.h.b16 %v224
    %v275 = vunpack.c.l.b16 %v225
    %v276 = vunpack.c.h.b16 %v225
    %v277 = vpack.c.b16 %v249, %v247
    %v278 = vpack.c.b16 %v250, %v248
    %v279 = vpack.c.b16 %v253, %v251
    %v280 = vpack.c.b16 %v254, %v252
    %v281 = vpack.c.b16 %v257, %v255
    %v282 = vpack.c.b16 %v258, %v256
    %v283 = vpack.c.b16 %v261, %v259
    %v284 = vpack.c.b16 %v262, %v260
    %v285 = vpack.c.b16 %v265, %v263
    %v286 = vpack.c.b16 %v266, %v264
    %v287 = vpack.c.b16 %v269, %v267
    %v288 = vpack.c.b16 %v270, %v268
    %v289 = vpack.c.b16 %v273, %v271
    %v290 = vpack.c.b16 %v274, %v272
    %v291 = vpack.c.b16 %v275, %v275
    %v292 = vpack.c.b16 %v276, %v276
    %vm307 = vcmask 982016
    %v309 = vsel %vm307, %v209, 0
    %v312 = vsel %vm307, %v210, 0
    %vm314 = vcmask 1043456
    %v316 = vsel %vm314, %v291, 0
    %v319 = vsel %vm314, %v292, 0
    %321 = vmatpush.bf16.msra.mxu0 %v316
    %322 = vmatpush.bf16.msra.mxu0 %v289
    %323 = vmatpush.bf16.msra.mxu0 %v287
    %324 = vmatpush.bf16.msra.mxu0 %v285
    %325 = vmatpush.bf16.msra.mxu0 %v283
    %326 = vmatpush.bf16.msra.mxu0 %v281
    %327 = vmatpush.bf16.msra.mxu0 %v279
    %328 = vmatpush.bf16.msra.mxu0 %v277
    %329 = vmatmul.bf16.gmra.mxu0 %v309
    %v330 = vpop.f32.mrf.mxu0
    %v331 = vadd.f32 %v228, %v330
    %v332 = vpop.f32.mrf.mxu0
    %v333 = vadd.f32 %v228, %v332
    %334 = vmatmul.bf16.gmra.mxu0 %v312
    %v335 = vpop.f32.mrf.mxu0
    %v336 = vadd.f32 %v228, %v335
    %v337 = vpop.f32.mrf.mxu0
    %338 = vdwg.mxu0
    %339 = vmatpush.bf16.msra.mxu0 %v319
    %340 = vmatpush.bf16.msra.mxu0 %v290
    %341 = vmatpush.bf16.msra.mxu0 %v288
    %342 = vmatpush.bf16.msra.mxu0 %v286
    %343 = vmatpush.bf16.msra.mxu0 %v284
    %344 = vmatpush.bf16.msra.mxu0 %v282
    %345 = vmatpush.bf16.msra.mxu0 %v280
    %346 = vmatpush.bf16.msra.mxu0 %v278
    %347 = vmatmul.bf16.gmra.mxu0 %v309
    %v348 = vpop.f32.mrf.mxu0
    %v349 = vadd.f32 %v229, %v348
    %v350 = vpop.f32.mrf.mxu0
    %v351 = vadd.f32 %v229, %v350
    %352 = vmatmul.bf16.gmra.mxu0 %v312
    %v353 = vpop.f32.mrf.mxu0
    %v354 = vadd.f32 %v229, %v353
    %v355 = vpop.f32.mrf.mxu0
    %356 = vdwg.mxu0
    %v357 = vmax.f32 %v331, 0.0
    %v358 = vmax.f32 %v349, 0.0
    %v359 = vmax.f32 %v333, 0.0
    %v360 = vmax.f32 %v351, 0.0
    %v361 = vmax.f32 %v336, 0.0
    %v362 = vmax.f32 %v354, 0.0
    %v363 = vpack.c.bf16 %v359, %v357
    %v364 = vpack.c.bf16 %v360, %v358
    %v365 = vpack.c.bf16 %v361, %v361
    %v366 = vpack.c.bf16 %v362, %v362
    %v367 = vld [vmem:[#allocation6] sm:$0xff]
    %v368 = vld [vmem:[#allocation6 + $0x8] sm:$0xf]
    %v369 = vld [vmem:[#allocation6 + $0xc] sm:$0xff]
    %v370 = vld [vmem:[#allocation6 + $0x14] sm:$0xf]
    %v371 = vld [vmem:[#allocation6 + $0x18] sm:$0xff]
    %v372 = vld [vmem:[#allocation6 + $0x20] sm:$0xf]
    %v373 = vld [vmem:[#allocation6 + $0x24] sm:$0xff]
    %v374 = vld [vmem:[#allocation6 + $0x2c] sm:$0xf]
    %v375 = vld [vmem:[#allocation6 + $0x30] sm:$0xff]
    %v376 = vld [vmem:[#allocation6 + $0x38] sm:$0xf]
    %v377 = vld [vmem:[#allocation6 + $0x3c] sm:$0xff]
    %v378 = vld [vmem:[#allocation6 + $0x44] sm:$0xf]
    %v379 = vld [vmem:[#allocation6 + $0x48] sm:$0xff]
    %v380 = vld [vmem:[#allocation6 + $0x50] sm:$0xf]
    %v381 = vld [vmem:[#allocation6 + $0x54] sm:$0xff]
    %v382 = vld [vmem:[#allocation6 + $0x5c] sm:$0xf]
    %v383 = vld [vmem:[#allocation6 + $0x60] sm:$0xff]
    %v384 = vld [vmem:[#allocation6 + $0x68] sm:$0xf]
    %v385 = vld [vmem:[#allocation6 + $0x6c] sm:$0xff]
    %v386 = vld [vmem:[#allocation6 + $0x74] sm:$0xf]
    %v387 = vld [vmem:[#allocation6 + $0x78] sm:$0xff]
    %v388 = vld [vmem:[#allocation6 + $0x80] sm:$0xf]
    %v389 = vld [vmem:[#allocation6 + $0x84] sm:$0xff]
    %v390 = vld [vmem:[#allocation6 + $0x8c] sm:$0xf]
    %v391 = vld [vmem:[#allocation6 + $0x90] sm:$0xff]
    %v392 = vld [vmem:[#allocation6 + $0x98] sm:$0xf]
    %v393 = vld [vmem:[#allocation6 + $0x9c] sm:$0xff]
    %v394 = vld [vmem:[#allocation6 + $0xa4] sm:$0xf]
    %v395 = vld [vmem:[#allocation6 + $0xa8] sm:$0xff]
    %v396 = vld [vmem:[#allocation6 + $0xb0] sm:$0xf]
    %v397 = vld [vmem:[#allocation6 + $0xb4] sm:$0xff]
    %v398 = vld [vmem:[#allocation6 + $0xbc] sm:$0xf]
    %v399 = vld [vmem:[#allocation6 + $0xc0] sm:$0xff]
    %v400 = vld [vmem:[#allocation6 + $0xc8] sm:$0xf]
    %v401 = vld [vmem:[#allocation6 + $0xcc] sm:$0xff]
    %v402 = vld [vmem:[#allocation6 + $0xd4] sm:$0xf]
    %v403 = vld [vmem:[#allocation6 + $0xd8] sm:$0xff]
    %v404 = vld [vmem:[#allocation6 + $0xe0] sm:$0xf]
    %v405 = vld [vmem:[#allocation6 + $0xe4] sm:$0xff]
    %v406 = vld [vmem:[#allocation6 + $0xec] sm:$0xf]
    %v407 = vld [vmem:[#allocation6 + $0xf0] sm:$0xff]
    %v408 = vld [vmem:[#allocation6 + $0xf8] sm:$0xf]
    %v409 = vld [vmem:[#allocation6 + $0xfc] sm:$0xff]
    %v410 = vld [vmem:[#allocation6 + $0x104] sm:$0xf]
    %v411 = vld [vmem:[#allocation6 + $0x108] sm:$0xff]
    %v412 = vld [vmem:[#allocation6 + $0x110] sm:$0xf]
    %v413 = vld [vmem:[#allocation6 + $0x114] sm:$0xff]
    %v414 = vld [vmem:[#allocation6 + $0x11c] sm:$0xf]
    %v415 = vld [vmem:[#allocation6 + $0x120] sm:$0xff]
    %v416 = vld [vmem:[#allocation6 + $0x128] sm:$0xf]
    %v417 = vld [vmem:[#allocation6 + $0x12c] sm:$0xff]
    %v418 = vld [vmem:[#allocation6 + $0x134] sm:$0xf]
    %v419 = vld [vmem:[#allocation6 + $0x138] sm:$0xff]
    %v420 = vld [vmem:[#allocation6 + $0x140] sm:$0xf]
    %v421 = vld [vmem:[#allocation6 + $0x144] sm:$0xff]
    %v422 = vld [vmem:[#allocation6 + $0x14c] sm:$0xf]
    %v423 = vld [vmem:[#allocation6 + $0x150] sm:$0xff]
    %v424 = vld [vmem:[#allocation6 + $0x158] sm:$0xf]
    %v425 = vld [vmem:[#allocation6 + $0x15c] sm:$0xff]
    %v426 = vld [vmem:[#allocation6 + $0x164] sm:$0xf]
    %v427 = vld [vmem:[#allocation6 + $0x168] sm:$0xff]
    %v428 = vld [vmem:[#allocation6 + $0x170] sm:$0xf]
    %v429 = vld [vmem:[#allocation6 + $0x174] sm:$0xff]
    %v430 = vld [vmem:[#allocation6 + $0x17c] sm:$0xf]
    %v431 = vld [vmem:[%s4] sm:$0x7]
    %v433 = vperm.slane %v431, 0
    %v434 = vperm.slane %v431, 1
    %v435 = vperm.slane %v431, 2
    %v503 = vunpack.c.l.b16 %v367
    %v504 = vunpack.c.h.b16 %v367
    %v505 = vunpack.c.l.b16 %v368
    %v506 = vunpack.c.l.b16 %v369
    %v507 = vunpack.c.h.b16 %v369
    %v508 = vunpack.c.l.b16 %v370
    %v509 = vunpack.c.l.b16 %v371
    %v510 = vunpack.c.h.b16 %v371
    %v511 = vunpack.c.l.b16 %v372
    %v512 = vunpack.c.l.b16 %v373
    %v513 = vunpack.c.h.b16 %v373
    %v514 = vunpack.c.l.b16 %v374
    %v515 = vunpack.c.l.b16 %v375
    %v516 = vunpack.c.h.b16 %v375
    %v517 = vunpack.c.l.b16 %v376
    %v518 = vunpack.c.l.b16 %v377
    %v519 = vunpack.c.h.b16 %v377
    %v520 = vunpack.c.l.b16 %v378
    %v521 = vunpack.c.l.b16 %v379
    %v522 = vunpack.c.h.b16 %v379
    %v523 = vunpack.c.l.b16 %v380
    %v524 = vunpack.c.l.b16 %v381
    %v525 = vunpack.c.h.b16 %v381
    %v526 = vunpack.c.l.b16 %v382
    %v527 = vunpack.c.l.b16 %v383
    %v528 = vunpack.c.h.b16 %v383
    %v529 = vunpack.c.l.b16 %v384
    %v530 = vunpack.c.l.b16 %v385
    %v531 = vunpack.c.h.b16 %v385
    %v532 = vunpack.c.l.b16 %v386
    %v533 = vunpack.c.l.b16 %v387
    %v534 = vunpack.c.h.b16 %v387
    %v535 = vunpack.c.l.b16 %v388
    %v536 = vunpack.c.l.b16 %v389
    %v537 = vunpack.c.h.b16 %v389
    %v538 = vunpack.c.l.b16 %v390
    %v539 = vunpack.c.l.b16 %v391
    %v540 = vunpack.c.h.b16 %v391
    %v541 = vunpack.c.l.b16 %v392
    %v542 = vunpack.c.l.b16 %v393
    %v543 = vunpack.c.h.b16 %v393
    %v544 = vunpack.c.l.b16 %v394
    %v545 = vunpack.c.l.b16 %v395
    %v546 = vunpack.c.h.b16 %v395
    %v547 = vunpack.c.l.b16 %v396
    %v548 = vunpack.c.l.b16 %v397
    %v549 = vunpack.c.h.b16 %v397
    %v550 = vunpack.c.l.b16 %v398
    %v551 = vunpack.c.l.b16 %v399
    %v552 = vunpack.c.h.b16 %v399
    %v553 = vunpack.c.l.b16 %v400
    %v554 = vunpack.c.l.b16 %v401
    %v555 = vunpack.c.h.b16 %v401
    %v556 = vunpack.c.l.b16 %v402
    %v557 = vunpack.c.l.b16 %v403
    %v558 = vunpack.c.h.b16 %v403
    %v559 = vunpack.c.l.b16 %v404
    %v560 = vunpack.c.l.b16 %v405
    %v561 = vunpack.c.h.b16 %v405
    %v562 = vunpack.c.l.b16 %v406
    %v563 = vunpack.c.l.b16 %v407
    %v564 = vunpack.c.h.b16 %v407
    %v565 = vunpack.c.l.b16 %v408
    %v566 = vunpack.c.l.b16 %v409
    %v567 = vunpack.c.h.b16 %v409
    %v568 = vunpack.c.l.b16 %v410
    %v569 = vunpack.c.l.b16 %v411
    %v570 = vunpack.c.h.b16 %v411
    %v571 = vunpack.c.l.b16 %v412
    %v572 = vunpack.c.l.b16 %v413
    %v573 = vunpack.c.h.b16 %v413
    %v574 = vunpack.c.l.b16 %v414
    %v575 = vunpack.c.l.b16 %v415
    %v576 = vunpack.c.h.b16 %v415
    %v577 = vunpack.c.l.b16 %v416
    %v578 = vunpack.c.l.b16 %v417
    %v579 = vunpack.c.h.b16 %v417
    %v580 = vunpack.c.l.b16 %v418
    %v581 = vunpack.c.l.b16 %v419
    %v582 = vunpack.c.h.b16 %v419
    %v583 = vunpack.c.l.b16 %v420
    %v584 = vunpack.c.l.b16 %v421
    %v585 = vunpack.c.h.b16 %v421
    %v586 = vunpack.c.l.b16 %v422
    %v587 = vunpack.c.l.b16 %v423
    %v588 = vunpack.c.h.b16 %v423
    %v589 = vunpack.c.l.b16 %v424
    %v590 = vunpack.c.l.b16 %v425
    %v591 = vunpack.c.h.b16 %v425
    %v592 = vunpack.c.l.b16 %v426
    %v593 = vunpack.c.l.b16 %v427
    %v594 = vunpack.c.h.b16 %v427
    %v595 = vunpack.c.l.b16 %v428
    %v596 = vunpack.c.l.b16 %v429
    %v597 = vunpack.c.h.b16 %v429
    %v598 = vunpack.c.l.b16 %v430
    %v599 = vpack.c.b16 %v506, %v503
    %v600 = vpack.c.b16 %v507, %v504
    %v601 = vpack.c.b16 %v508, %v505
    %v602 = vpack.c.b16 %v512, %v509
    %v603 = vpack.c.b16 %v513, %v510
    %v604 = vpack.c.b16 %v514, %v511
    %v605 = vpack.c.b16 %v518, %v515
    %v606 = vpack.c.b16 %v519, %v516
    %v607 = vpack.c.b16 %v520, %v517
    %v608 = vpack.c.b16 %v524, %v521
    %v609 = vpack.c.b16 %v525, %v522
    %v610 = vpack.c.b16 %v526, %v523
    %v611 = vpack.c.b16 %v530, %v527
    %v612 = vpack.c.b16 %v531, %v528
    %v613 = vpack.c.b16 %v532, %v529
    %v614 = vpack.c.b16 %v536, %v533
    %v615 = vpack.c.b16 %v537, %v534
    %v616 = vpack.c.b16 %v538, %v535
    %v617 = vpack.c.b16 %v542, %v539
    %v618 = vpack.c.b16 %v543, %v540
    %v619 = vpack.c.b16 %v544, %v541
    %v620 = vpack.c.b16 %v548, %v545
    %v621 = vpack.c.b16 %v549, %v546
    %v622 = vpack.c.b16 %v550, %v547
    %v623 = vpack.c.b16 %v554, %v551
    %v624 = vpack.c.b16 %v555, %v552
    %v625 = vpack.c.b16 %v556, %v553
    %v626 = vpack.c.b16 %v560, %v557
    %v627 = vpack.c.b16 %v561, %v558
    %v628 = vpack.c.b16 %v562, %v559
    %v629 = vpack.c.b16 %v566, %v563
    %v630 = vpack.c.b16 %v567, %v564
    %v631 = vpack.c.b16 %v568, %v565
    %v632 = vpack.c.b16 %v572, %v569
    %v633 = vpack.c.b16 %v573, %v570
    %v634 = vpack.c.b16 %v574, %v571
    %v635 = vpack.c.b16 %v578, %v575
    %v636 = vpack.c.b16 %v579, %v576
    %v637 = vpack.c.b16 %v580, %v577
    %v638 = vpack.c.b16 %v584, %v581
    %v639 = vpack.c.b16 %v585, %v582
    %v640 = vpack.c.b16 %v586, %v583
    %v641 = vpack.c.b16 %v590, %v587
    %v642 = vpack.c.b16 %v591, %v588
    %v643 = vpack.c.b16 %v592, %v589
    %v644 = vpack.c.b16 %v596, %v593
    %v645 = vpack.c.b16 %v597, %v594
    %v646 = vpack.c.b16 %v598, %v595
    %695 = vmatpush.bf16.msra.mxu0 %v620
    %696 = vmatpush.bf16.msra.mxu0 %v617
    %697 = vmatpush.bf16.msra.mxu0 %v614
    %698 = vmatpush.bf16.msra.mxu0 %v611
    %699 = vmatpush.bf16.msra.mxu0 %v608
    %700 = vmatpush.bf16.msra.mxu0 %v605
    %701 = vmatpush.bf16.msra.mxu0 %v602
    %702 = vmatpush.bf16.msra.mxu0 %v599
    %703 = vmatmul.bf16.gmra.mxu0 %v363
    %v704 = vpop.f32.mrf.mxu0
    %v705 = vadd.f32 %v433, %v704
    %v706 = vpop.f32.mrf.mxu0
    %v707 = vadd.f32 %v433, %v706
    %708 = vmatmul.bf16.gmra.mxu0 %v365
    %v709 = vpop.f32.mrf.mxu0
    %v710 = vadd.f32 %v433, %v709
    %v711 = vpop.f32.mrf.mxu0
    %712 = vdwg.mxu0
    %713 = vmatpush.bf16.msra.mxu0 %v644
    %714 = vmatpush.bf16.msra.mxu0 %v641
    %715 = vmatpush.bf16.msra.mxu0 %v638
    %716 = vmatpush.bf16.msra.mxu0 %v635
    %717 = vmatpush.bf16.msra.mxu0 %v632
    %718 = vmatpush.bf16.msra.mxu0 %v629
    %719 = vmatpush.bf16.msra.mxu0 %v626
    %720 = vmatpush.bf16.msra.mxu0 %v623
    %721 = vmatmul.bf16.gmra.mxu0 %v364
    %v722 = vpop.f32.mrf.mxu0
    %v723 = vadd.f32 %v705, %v722
    %v724 = vpop.f32.mrf.mxu0
    %v725 = vadd.f32 %v707, %v724
    %726 = vmatmul.bf16.gmra.mxu0 %v366
    %v727 = vpop.f32.mrf.mxu0
    %v728 = vadd.f32 %v710, %v727
    %v729 = vpop.f32.mrf.mxu0
    %730 = vdwg.mxu0
    %731 = vmatpush.bf16.msra.mxu0 %v621
    %732 = vmatpush.bf16.msra.mxu0 %v618
    %733 = vmatpush.bf16.msra.mxu0 %v615
    %734 = vmatpush.bf16.msra.mxu0 %v612
    %735 = vmatpush.bf16.msra.mxu0 %v609
    %736 = vmatpush.bf16.msra.mxu0 %v606
    %737 = vmatpush.bf16.msra.mxu0 %v603
    %738 = vmatpush.bf16.msra.mxu0 %v600
    %739 = vmatmul.bf16.gmra.mxu0 %v363
    %v740 = vpop.f32.mrf.mxu0
    %v741 = vadd.f32 %v434, %v740
    %v742 = vpop.f32.mrf.mxu0
    %v743 = vadd.f32 %v434, %v742
    %744 = vmatmul.bf16.gmra.mxu0 %v365
    %v745 = vpop.f32.mrf.mxu0
    %v746 = vadd.f32 %v434, %v745
    %v747 = vpop.f32.mrf.mxu0
    %748 = vdwg.mxu0
    %749 = vmatpush.bf16.msra.mxu0 %v645
    %750 = vmatpush.bf16.msra.mxu0 %v642
    %751 = vmatpush.bf16.msra.mxu0 %v639
    %752 = vmatpush.bf16.msra.mxu0 %v636
    %753 = vmatpush.bf16.msra.mxu0 %v633
    %754 = vmatpush.bf16.msra.mxu0 %v630
    %755 = vmatpush.bf16.msra.mxu0 %v627
    %756 = vmatpush.bf16.msra.mxu0 %v624
    %757 = vmatmul.bf16.gmra.mxu0 %v364
    %v758 = vpop.f32.mrf.mxu0
    %v759 = vadd.f32 %v741, %v758
    %v760 = vpop.f32.mrf.mxu0
    %v761 = vadd.f32 %v743, %v760
    %762 = vmatmul.bf16.gmra.mxu0 %v366
    %v763 = vpop.f32.mrf.mxu0
    %v764 = vadd.f32 %v746, %v763
    %v765 = vpop.f32.mrf.mxu0
    %766 = vdwg.mxu0
    %767 = vmatpush.bf16.msra.mxu0 %v622
    %768 = vmatpush.bf16.msra.mxu0 %v619
    %769 = vmatpush.bf16.msra.mxu0 %v616
    %770 = vmatpush.bf16.msra.mxu0 %v613
    %771 = vmatpush.bf16.msra.mxu0 %v610
    %772 = vmatpush.bf16.msra.mxu0 %v607
    %773 = vmatpush.bf16.msra.mxu0 %v604
    %774 = vmatpush.bf16.msra.mxu0 %v601
    %775 = vmatmul.bf16.gmra.mxu0 %v363
    %v776 = vpop.f32.mrf.mxu0
    %v777 = vadd.f32 %v435, %v776
    %v778 = vpop.f32.mrf.mxu0
    %v779 = vadd.f32 %v435, %v778
    %780 = vmatmul.bf16.gmra.mxu0 %v365
    %v781 = vpop.f32.mrf.mxu0
    %v782 = vadd.f32 %v435, %v781
    %v783 = vpop.f32.mrf.mxu0
    %784 = vdwg.mxu0
    %785 = vmatpush.bf16.msra.mxu0 %v646
    %786 = vmatpush.bf16.msra.mxu0 %v643
    %787 = vmatpush.bf16.msra.mxu0 %v640
    %788 = vmatpush.bf16.msra.mxu0 %v637
    %789 = vmatpush.bf16.msra.mxu0 %v634
    %790 = vmatpush.bf16.msra.mxu0 %v631
    %791 = vmatpush.bf16.msra.mxu0 %v628
    %792 = vmatpush.bf16.msra.mxu0 %v625
    %793 = vmatmul.bf16.gmra.mxu0 %v364
    %v794 = vpop.f32.mrf.mxu0
    %v795 = vadd.f32 %v777, %v794
    %v796 = vpop.f32.mrf.mxu0
    %v797 = vadd.f32 %v779, %v796
    %798 = vmatmul.bf16.gmra.mxu0 %v366
    %v799 = vpop.f32.mrf.mxu0
    %v800 = vadd.f32 %v782, %v799
    %v801 = vpop.f32.mrf.mxu0
    %802 = vdwg.mxu0
    %v812 = vrot.slane %v759, 7
    %v813 = vrot.slane %v795, 6
    %v814 = vrot.slane %v761, 7
    %v815 = vrot.slane %v797, 6
    %v816 = vrot.slane %v764, 7
    %v817 = vrot.slane %v800, 6
    %vm818 = vcmask 1040384
    %v819 = vsel %vm818, %v723, %v812
    %vm820 = vcmask 1041408
    %v821 = vsel %vm820, %v819, %v813
    %vm822 = vcmask 1041409
    %v823 = vsel %vm822, %v723, %v812
    %vm824 = vcmask 1042433
    %v825 = vsel %vm824, %v823, %v813
    %v826 = vrot.slane %v825, 1
    %vm827 = vcmask 1042434
    %v828 = vsel %vm827, %v723, %v812
    %vm829 = vcmask 1043458
    %v830 = vsel %vm829, %v828, %v813
    %v831 = vrot.slane %v830, 2
    %vm832 = vcmask 1043459
    %v833 = vsel %vm832, %v723, %v812
    %vm834 = vcmask 1044483
    %v835 = vsel %vm834, %v833, %v813
    %v836 = vrot.slane %v835, 3
    %vm837 = vcmask 1044484
    %v838 = vsel %vm837, %v723, %v812
    %vm839 = vcmask 1045508
    %v840 = vsel %vm839, %v838, %v813
    %v841 = vrot.slane %v840, 4
    %vm842 = vcmask 1045509
    %v843 = vsel %vm842, %v723, %v812
    %vm844 = vcmask 1046533
    %v845 = vsel %vm844, %v843, %v813
    %v846 = vrot.slane %v845, 5
    %vm847 = vcmask 1046534
    %v848 = vsel %vm847, %v723, %v812
    %v849 = vsel %vm107, %v813, %v848
    %v850 = vrot.slane %v849, 6
    %v851 = vsel %vm88, %v812, %v723
    %vm852 = vcmask 1046529
    %v853 = vsel %vm852, %v813, %v851
    %v854 = vrot.slane %v853, 7
    %v855 = vsel %vm818, %v725, %v814
    %v856 = vsel %vm820, %v855, %v815
    %v857 = vsel %vm822, %v725, %v814
    %v858 = vsel %vm824, %v857, %v815
    %v859 = vrot.slane %v858, 1
    %v860 = vsel %vm827, %v725, %v814
    %v861 = vsel %vm829, %v860, %v815
    %v862 = vrot.slane %v861, 2
    %v863 = vsel %vm832, %v725, %v814
    %v864 = vsel %vm834, %v863, %v815
    %v865 = vrot.slane %v864, 3
    %v866 = vsel %vm837, %v725, %v814
    %v867 = vsel %vm839, %v866, %v815
    %v868 = vrot.slane %v867, 4
    %v869 = vsel %vm842, %v725, %v814
    %v870 = vsel %vm844, %v869, %v815
    %v871 = vrot.slane %v870, 5
    %v872 = vsel %vm847, %v725, %v814
    %v873 = vsel %vm107, %v815, %v872
    %v874 = vrot.slane %v873, 6
    %v875 = vsel %vm88, %v814, %v725
    %v876 = vsel %vm852, %v815, %v875
    %v877 = vrot.slane %v876, 7
    %v878 = vsel %vm818, %v728, %v816
    %v879 = vsel %vm820, %v878, %v817
    %v880 = vsel %vm822, %v728, %v816
    %v881 = vsel %vm824, %v880, %v817
    %v882 = vrot.slane %v881, 1
    %883 = vst [vmem:[#allocation1] ss:$2 sm:$0xff] %v821
    %s884 = scalar_lea.vmem [#allocation1], 1
    %885 = vst [vmem:[%s884] ss:$2 sm:$0xff] %v859
    %v886 = vld [vmem:[#allocation1] sm:$0xff]
    %888 = vst [vmem:[#allocation2] sm:$0x3f] %v886
    %889 = vst [vmem:[#allocation1] ss:$2 sm:$0xff] %v826
    %s890 = scalar_lea.vmem [#allocation1], 1
    %891 = vst [vmem:[%s890] ss:$2 sm:$0xff] %v862
    %v892 = vld [vmem:[#allocation1] sm:$0xff]
    %s894 = scalar_lea.vmem [#allocation2], 6
    %895 = vst [vmem:[%s894] sm:$0x3f] %v892
    %896 = vst [vmem:[#allocation1] ss:$2 sm:$0xff] %v831
    %s897 = scalar_lea.vmem [#allocation1], 1
    %898 = vst [vmem:[%s897] ss:$2 sm:$0xff] %v865
    %v899 = vld [vmem:[#allocation1] sm:$0xff]
    %s901 = scalar_lea.vmem [#allocation2], 12
    %902 = vst [vmem:[%s901] sm:$0x3f] %v899
    %903 = vst [vmem:[#allocation1] ss:$2 sm:$0xff] %v836
    %s904 = scalar_lea.vmem [#allocation1], 1
    %905 = vst [vmem:[%s904] ss:$2 sm:$0xff] %v868
    %v906 = vld [vmem:[#allocation1] sm:$0xff]
    %s908 = scalar_lea.vmem [#allocation2], 18
    %909 = vst [vmem:[%s908] sm:$0x3f] %v906
    %910 = vst [vmem:[#allocation1] ss:$2 sm:$0xff] %v841
    %s911 = scalar_lea.vmem [#allocation1], 1
    %912 = vst [vmem:[%s911] ss:$2 sm:$0xff] %v871
    %v913 = vld [vmem:[#allocation1] sm:$0xff]
    %s915 = scalar_lea.vmem [#allocation2], 24
    %916 = vst [vmem:[%s915] sm:$0x3f] %v913
    %917 = vst [vmem:[#allocation1] ss:$2 sm:$0xff] %v846
    %s918 = scalar_lea.vmem [#allocation1], 1
    %919 = vst [vmem:[%s918] ss:$2 sm:$0xff] %v874
    %v920 = vld [vmem:[#allocation1] sm:$0xff]
    %s922 = scalar_lea.vmem [#allocation2], 30
    %923 = vst [vmem:[%s922] sm:$0x3f] %v920
    %924 = vst [vmem:[#allocation1] ss:$2 sm:$0xff] %v850
    %s925 = scalar_lea.vmem [#allocation1], 1
    %926 = vst [vmem:[%s925] ss:$2 sm:$0xff] %v877
    %v927 = vld [vmem:[#allocation1] sm:$0xff]
    %s929 = scalar_lea.vmem [#allocation2], 36
    %930 = vst [vmem:[%s929] sm:$0x3f] %v927
    %931 = vst [vmem:[#allocation1] ss:$2 sm:$0xff] %v854
    %s932 = scalar_lea.vmem [#allocation1], 1
    %933 = vst [vmem:[%s932] ss:$2 sm:$0xff] %v879
    %v934 = vld [vmem:[#allocation1] sm:$0xff]
    %s936 = scalar_lea.vmem [#allocation2], 42
    %937 = vst [vmem:[%s936] sm:$0x3f] %v934
    %938 = vst [vmem:[#allocation1] ss:$2 sm:$0xff] %v856
    %s939 = scalar_lea.vmem [#allocation1], 1
    %940 = vst [vmem:[%s939] ss:$2 sm:$0xff] %v882
    %v941 = vld [vmem:[#allocation1] sm:$0xff]
    %s943 = scalar_lea.vmem [#allocation2], 48
    %944 = vst [vmem:[%s943] sm:$0x3f] %v941
    %v945 = vld [vmem:[#allocation8] sm:$0xff]
    %v946 = vld [vmem:[#allocation8 + $0x8] sm:$0xf]
    %v947 = vld [vmem:[#allocation8 + $0xc] sm:$0xff]
    %v948 = vld [vmem:[#allocation8 + $0x14] sm:$0xf]
    %v949 = vld [vmem:[#allocation8 + $0x18] sm:$0xff]
    %v950 = vld [vmem:[#allocation8 + $0x20] sm:$0xf]
    %v951 = vld [vmem:[#allocation8 + $0x24] sm:$0xff]
    %v952 = vld [vmem:[#allocation8 + $0x2c] sm:$0xf]
    %v953 = vld [vmem:[#allocation8 + $0x30] sm:$0xff]
    %v954 = vld [vmem:[#allocation8 + $0x38] sm:$0xf]
    %v955 = vld [vmem:[#allocation8 + $0x3c] sm:$0xff]
    %v956 = vld [vmem:[#allocation8 + $0x44] sm:$0xf]
    %v957 = vld [vmem:[#allocation8 + $0x48] sm:$0xff]
    %v958 = vld [vmem:[#allocation8 + $0x50] sm:$0xf]
    %v959 = vld [vmem:[#allocation8 + $0x54] sm:$0xff]
    %v960 = vld [vmem:[#allocation8 + $0x5c] sm:$0xf]
    %v961 = vld [vmem:[#allocation8 + $0x60] sm:$0xff]
    %v962 = vld [vmem:[#allocation8 + $0x68] sm:$0xf]
    %v963 = vld [vmem:[#allocation8 + $0x6c] sm:$0xff]
    %v964 = vld [vmem:[#allocation8 + $0x74] sm:$0xf]
    %v965 = vld [vmem:[#allocation8 + $0x78] sm:$0xff]
    %v966 = vld [vmem:[#allocation8 + $0x80] sm:$0xf]
    %v967 = vld [vmem:[#allocation8 + $0x84] sm:$0xff]
    %v968 = vld [vmem:[#allocation8 + $0x8c] sm:$0xf]
    %v969 = vld [vmem:[#allocation8 + $0x90] sm:$0xff]
    %v970 = vld [vmem:[#allocation8 + $0x98] sm:$0xf]
    %v971 = vld [vmem:[#allocation8 + $0x9c] sm:$0xff]
    %v972 = vld [vmem:[#allocation8 + $0xa4] sm:$0xf]
    %v973 = vld [vmem:[#allocation8 + $0xa8] sm:$0xff]
    %v974 = vld [vmem:[#allocation8 + $0xb0] sm:$0xf]
    %v975 = vld [vmem:[#allocation8 + $0xb4] sm:$0xff]
    %v976 = vld [vmem:[#allocation8 + $0xbc] sm:$0xf]
    %v977 = vld [vmem:[%s6] sm:$0x7]
    %v979 = vperm.slane %v977, 0
    %v980 = vperm.slane %v977, 1
    %v981 = vperm.slane %v977, 2
    %v985 = vld [vmem:[#allocation2] sm:$0x3f]
    %v1018 = vunpack.c.l.b16 %v945
    %v1019 = vunpack.c.h.b16 %v945
    %v1020 = vunpack.c.l.b16 %v946
    %v1021 = vunpack.c.l.b16 %v947
    %v1022 = vunpack.c.h.b16 %v947
    %v1023 = vunpack.c.l.b16 %v948
    %v1024 = vunpack.c.l.b16 %v949
    %v1025 = vunpack.c.h.b16 %v949
    %v1026 = vunpack.c.l.b16 %v950
    %v1027 = vunpack.c.l.b16 %v951
    %v1028 = vunpack.c.h.b16 %v951
    %v1029 = vunpack.c.l.b16 %v952
    %v1030 = vunpack.c.l.b16 %v953
    %v1031 = vunpack.c.h.b16 %v953
    %v1032 = vunpack.c.l.b16 %v954
    %v1033 = vunpack.c.l.b16 %v955
    %v1034 = vunpack.c.h.b16 %v955
    %v1035 = vunpack.c.l.b16 %v956
    %v1036 = vunpack.c.l.b16 %v957
    %v1037 = vunpack.c.h.b16 %v957
    %v1038 = vunpack.c.l.b16 %v958
    %v1039 = vunpack.c.l.b16 %v959
    %v1040 = vunpack.c.h.b16 %v959
    %v1041 = vunpack.c.l.b16 %v960
    %v1042 = vunpack.c.l.b16 %v961
    %v1043 = vunpack.c.h.b16 %v961
    %v1044 = vunpack.c.l.b16 %v962
    %v1045 = vunpack.c.l.b16 %v963
    %v1046 = vunpack.c.h.b16 %v963
    %v1047 = vunpack.c.l.b16 %v964
    %v1048 = vunpack.c.l.b16 %v965
    %v1049 = vunpack.c.h.b16 %v965
    %v1050 = vunpack.c.l.b16 %v966
    %v1051 = vunpack.c.l.b16 %v967
    %v1052 = vunpack.c.h.b16 %v967
    %v1053 = vunpack.c.l.b16 %v968
    %v1054 = vunpack.c.l.b16 %v969
    %v1055 = vunpack.c.h.b16 %v969
    %v1056 = vunpack.c.l.b16 %v970
    %v1057 = vunpack.c.l.b16 %v971
    %v1058 = vunpack.c.h.b16 %v971
    %v1059 = vunpack.c.l.b16 %v972
    %v1060 = vunpack.c.l.b16 %v973
    %v1061 = vunpack.c.h.b16 %v973
    %v1062 = vunpack.c.l.b16 %v974
    %v1063 = vunpack.c.l.b16 %v975
    %v1064 = vunpack.c.h.b16 %v975
    %v1065 = vunpack.c.l.b16 %v976
    %v1066 = vpack.c.b16 %v1021, %v1018
    %v1067 = vpack.c.b16 %v1022, %v1019
    %v1068 = vpack.c.b16 %v1023, %v1020
    %v1069 = vpack.c.b16 %v1027, %v1024
    %v1070 = vpack.c.b16 %v1028, %v1025
    %v1071 = vpack.c.b16 %v1029, %v1026
    %v1072 = vpack.c.b16 %v1033, %v1030
    %v1073 = vpack.c.b16 %v1034, %v1031
    %v1074 = vpack.c.b16 %v1035, %v1032
    %v1075 = vpack.c.b16 %v1039, %v1036
    %v1076 = vpack.c.b16 %v1040, %v1037
    %v1077 = vpack.c.b16 %v1041, %v1038
    %v1078 = vpack.c.b16 %v1045, %v1042
    %v1079 = vpack.c.b16 %v1046, %v1043
    %v1080 = vpack.c.b16 %v1047, %v1044
    %v1081 = vpack.c.b16 %v1051, %v1048
    %v1082 = vpack.c.b16 %v1052, %v1049
    %v1083 = vpack.c.b16 %v1053, %v1050
    %v1084 = vpack.c.b16 %v1057, %v1054
    %v1085 = vpack.c.b16 %v1058, %v1055
    %v1086 = vpack.c.b16 %v1059, %v1056
    %v1087 = vpack.c.b16 %v1063, %v1060
    %v1088 = vpack.c.b16 %v1064, %v1061
    %v1089 = vpack.c.b16 %v1065, %v1062
    %1114 = vmatpush.bf16.msra.mxu0 %v1087
    %1115 = vmatpush.bf16.msra.mxu0 %v1084
    %1116 = vmatpush.bf16.msra.mxu0 %v1081
    %1117 = vmatpush.bf16.msra.mxu0 %v1078
    %1118 = vmatpush.bf16.msra.mxu0 %v1075
    %1119 = vmatpush.bf16.msra.mxu0 %v1072
    %1120 = vmatpush.bf16.msra.mxu0 %v1069
    %1121 = vmatpush.bf16.msra.mxu0 %v1066
    %1122 = vmatmul.bf16.gmra.mxu0 0
    %v1123 = vpop.f32.mrf.mxu0
    %v1124 = vadd.f32 %v979, %v1123
    %v1125 = vpop.f32.mrf.mxu0
    %1126 = vdwg.mxu0
    %1127 = vmatpush.bf16.msra.mxu0 %v1088
    %1128 = vmatpush.bf16.msra.mxu0 %v1085
    %1129 = vmatpush.bf16.msra.mxu0 %v1082
    %1130 = vmatpush.bf16.msra.mxu0 %v1079
    %1131 = vmatpush.bf16.msra.mxu0 %v1076
    %1132 = vmatpush.bf16.msra.mxu0 %v1073
    %1133 = vmatpush.bf16.msra.mxu0 %v1070
    %1134 = vmatpush.bf16.msra.mxu0 %v1067
    %1135 = vmatmul.bf16.gmra.mxu0 0
    %v1136 = vpop.f32.mrf.mxu0
    %v1137 = vadd.f32 %v980, %v1136
    %v1138 = vpop.f32.mrf.mxu0
    %1139 = vdwg.mxu0
    %1140 = vmatpush.bf16.msra.mxu0 %v1089
    %1141 = vmatpush.bf16.msra.mxu0 %v1086
    %1142 = vmatpush.bf16.msra.mxu0 %v1083
    %1143 = vmatpush.bf16.msra.mxu0 %v1080
    %1144 = vmatpush.bf16.msra.mxu0 %v1077
    %1145 = vmatpush.bf16.msra.mxu0 %v1074
    %1146 = vmatpush.bf16.msra.mxu0 %v1071
    %1147 = vmatpush.bf16.msra.mxu0 %v1068
    %1148 = vmatmul.bf16.gmra.mxu0 0
    %v1149 = vpop.f32.mrf.mxu0
    %v1150 = vadd.f32 %v981, %v1149
    %v1151 = vpop.f32.mrf.mxu0
    %1152 = vdwg.mxu0
    %v1155 = vrot.slane %v1137, 6
    %v1156 = vsel %vm820, %v1124, %v1155
    %v1158 = vadd.f32 %v985, %v1156
    %v1159 = vxor.u32 %v1158, 2147483648
    %v1160 = vmul.f32 %v1159, 1.442695
    %v1161 = vpow.pop %v1160
    %v1162 = vadd.f32 %v1161, 1.0
    %v1163 = vrcp.pop %v1162
    %v1164 = vmul.f32 %v1162, %v1163
    %v1165 = vsub.f32 1.0, %v1164
    %v1166 = vmul.f32 %v1163, %v1165
    %v1167 = vadd.f32 %v1163, %v1166
    %vm1168 = vweird.f32 %v1162
    %vm1169 = vweird.f32 %v1163
    %vm1170 = vmor %vm1168, %vm1169
    %v1171 = vsel %vm1170, %v1163, %v1167
    %v1172 = vand.u32 2147483647, %v1162
    %vm1173 = vcmp.eq.f32.partialorder %v1172, 8.507059e+37
    %v1174 = vand.u32 %v1162, 2147483648
    %v1175 = vor.u32 1.1754944e-38, %v1174
    %v1176 = vsel %vm1173, %v1175, %v1171
    %v1177 = vmul.f32 1.0, %v1176
    %v1178 = vmul.f32 %v1177, %v1150
    %v1180 = vrot.slane %v985, 4
    %v1182 = vadd.f32 %v1180, %v1178
    %v1183 = vtanh.pop %v1182
    %v1185 = vrot.slane %v1177, 2
    %v1187 = vsub.f32 1.0, %v1185
    %v1188 = vmul.f32 %v1187, %v1183
    %v1189 = vmul.f32 %v1185, 0.0
    %v1190 = vadd.f32 %v1188, %v1189
    %v1191 = vld [vmem:[%s894] sm:$0x3f]
    %v1192 = vpack.c.bf16 %v1190, %v1190
    %1193 = vmatpush.bf16.msra.mxu0 %v1087
    %1194 = vmatpush.bf16.msra.mxu0 %v1084
    %1195 = vmatpush.bf16.msra.mxu0 %v1081
    %1196 = vmatpush.bf16.msra.mxu0 %v1078
    %1197 = vmatpush.bf16.msra.mxu0 %v1075
    %1198 = vmatpush.bf16.msra.mxu0 %v1072
    %1199 = vmatpush.bf16.msra.mxu0 %v1069
    %1200 = vmatpush.bf16.msra.mxu0 %v1066
    %1201 = vmatmul.bf16.gmra.mxu0 %v1192
    %v1202 = vpop.f32.mrf.mxu0
    %v1203 = vadd.f32 %v979, %v1202
    %v1204 = vpop.f32.mrf.mxu0
    %1205 = vdwg.mxu0
    %1206 = vmatpush.bf16.msra.mxu0 %v1088
    %1207 = vmatpush.bf16.msra.mxu0 %v1085
    %1208 = vmatpush.bf16.msra.mxu0 %v1082
    %1209 = vmatpush.bf16.msra.mxu0 %v1079
    %1210 = vmatpush.bf16.msra.mxu0 %v1076
    %1211 = vmatpush.bf16.msra.mxu0 %v1073
    %1212 = vmatpush.bf16.msra.mxu0 %v1070
    %1213 = vmatpush.bf16.msra.mxu0 %v1067
    %1214 = vmatmul.bf16.gmra.mxu0 %v1192
    %v1215 = vpop.f32.mrf.mxu0
    %v1216 = vadd.f32 %v980, %v1215
    %v1217 = vpop.f32.mrf.mxu0
    %1218 = vdwg.mxu0
    %1219 = vmatpush.bf16.msra.mxu0 %v1089
    %1220 = vmatpush.bf16.msra.mxu0 %v1086
    %1221 = vmatpush.bf16.msra.mxu0 %v1083
    %1222 = vmatpush.bf16.msra.mxu0 %v1080
    %1223 = vmatpush.bf16.msra.mxu0 %v1077
    %1224 = vmatpush.bf16.msra.mxu0 %v1074
    %1225 = vmatpush.bf16.msra.mxu0 %v1071
    %1226 = vmatpush.bf16.msra.mxu0 %v1068
    %1227 = vmatmul.bf16.gmra.mxu0 %v1192
    %v1228 = vpop.f32.mrf.mxu0
    %v1229 = vadd.f32 %v981, %v1228
    %v1230 = vpop.f32.mrf.mxu0
    %1231 = vdwg.mxu0
    %v1234 = vrot.slane %v1216, 6
    %v1235 = vsel %vm820, %v1203, %v1234
    %v1237 = vadd.f32 %v1191, %v1235
    %v1238 = vxor.u32 %v1237, 2147483648
    %v1239 = vmul.f32 %v1238, 1.442695
    %v1240 = vpow.pop %v1239
    %v1241 = vadd.f32 %v1240, 1.0
    %v1242 = vrcp.pop %v1241
    %v1243 = vmul.f32 %v1241, %v1242
    %v1244 = vsub.f32 1.0, %v1243
    %v1245 = vmul.f32 %v1242, %v1244
    %v1246 = vadd.f32 %v1242, %v1245
    %vm1247 = vweird.f32 %v1241
    %vm1248 = vweird.f32 %v1242
    %vm1249 = vmor %vm1247, %vm1248
    %v1250 = vsel %vm1249, %v1242, %v1246
    %v1251 = vand.u32 2147483647, %v1241
    %vm1252 = vcmp.eq.f32.partialorder %v1251, 8.507059e+37
    %v1253 = vand.u32 %v1241, 2147483648
    %v1254 = vor.u32 1.1754944e-38, %v1253
    %v1255 = vsel %vm1252, %v1254, %v1250
    %v1256 = vmul.f32 1.0, %v1255
    %v1257 = vmul.f32 %v1256, %v1229
    %v1259 = vrot.slane %v1191, 4
    %v1261 = vadd.f32 %v1259, %v1257
    %v1262 = vtanh.pop %v1261
    %v1264 = vrot.slane %v1256, 2
    %v1266 = vsub.f32 1.0, %v1264
    %v1267 = vmul.f32 %v1266, %v1262
    %v1268 = vmul.f32 %v1264, %v1190
    %v1269 = vadd.f32 %v1267, %v1268
    %v1270 = vld [vmem:[%s901] sm:$0x3f]
    %v1271 = vpack.c.bf16 %v1269, %v1269
    %1272 = vmatpush.bf16.msra.mxu0 %v1087
    %1273 = vmatpush.bf16.msra.mxu0 %v1084
    %1274 = vmatpush.bf16.msra.mxu0 %v1081
    %1275 = vmatpush.bf16.msra.mxu0 %v1078
    %1276 = vmatpush.bf16.msra.mxu0 %v1075
    %1277 = vmatpush.bf16.msra.mxu0 %v1072
    %1278 = vmatpush.bf16.msra.mxu0 %v1069
    %1279 = vmatpush.bf16.msra.mxu0 %v1066
    %1280 = vmatmul.bf16.gmra.mxu0 %v1271
    %v1281 = vpop.f32.mrf.mxu0
    %v1282 = vadd.f32 %v979, %v1281
    %v1283 = vpop.f32.mrf.mxu0
    %1284 = vdwg.mxu0
    %1285 = vmatpush.bf16.msra.mxu0 %v1088
    %1286 = vmatpush.bf16.msra.mxu0 %v1085
    %1287 = vmatpush.bf16.msra.mxu0 %v1082
    %1288 = vmatpush.bf16.msra.mxu0 %v1079
    %1289 = vmatpush.bf16.msra.mxu0 %v1076
    %1290 = vmatpush.bf16.msra.mxu0 %v1073
    %1291 = vmatpush.bf16.msra.mxu0 %v1070
    %1292 = vmatpush.bf16.msra.mxu0 %v1067
    %1293 = vmatmul.bf16.gmra.mxu0 %v1271
    %v1294 = vpop.f32.mrf.mxu0
    %v1295 = vadd.f32 %v980, %v1294
    %v1296 = vpop.f32.mrf.mxu0
    %1297 = vdwg.mxu0
    %1298 = vmatpush.bf16.msra.mxu0 %v1089
    %1299 = vmatpush.bf16.msra.mxu0 %v1086
    %1300 = vmatpush.bf16.msra.mxu0 %v1083
    %1301 = vmatpush.bf16.msra.mxu0 %v1080
    %1302 = vmatpush.bf16.msra.mxu0 %v1077
    %1303 = vmatpush.bf16.msra.mxu0 %v1074
    %1304 = vmatpush.bf16.msra.mxu0 %v1071
    %1305 = vmatpush.bf16.msra.mxu0 %v1068
    %1306 = vmatmul.bf16.gmra.mxu0 %v1271
    %v1307 = vpop.f32.mrf.mxu0
    %v1308 = vadd.f32 %v981, %v1307
    %v1309 = vpop.f32.mrf.mxu0
    %1310 = vdwg.mxu0
    %v1313 = vrot.slane %v1295, 6
    %v1314 = vsel %vm820, %v1282, %v1313
    %v1316 = vadd.f32 %v1270, %v1314
    %v1317 = vxor.u32 %v1316, 2147483648
    %v1318 = vmul.f32 %v1317, 1.442695
    %v1319 = vpow.pop %v1318
    %v1320 = vadd.f32 %v1319, 1.0
    %v1321 = vrcp.pop %v1320
    %v1322 = vmul.f32 %v1320, %v1321
    %v1323 = vsub.f32 1.0, %v1322
    %v1324 = vmul.f32 %v1321, %v1323
    %v1325 = vadd.f32 %v1321, %v1324
    %vm1326 = vweird.f32 %v1320
    %vm1327 = vweird.f32 %v1321
    %vm1328 = vmor %vm1326, %vm1327
    %v1329 = vsel %vm1328, %v1321, %v1325
    %v1330 = vand.u32 2147483647, %v1320
    %vm1331 = vcmp.eq.f32.partialorder %v1330, 8.507059e+37
    %v1332 = vand.u32 %v1320, 2147483648
    %v1333 = vor.u32 1.1754944e-38, %v1332
    %v1334 = vsel %vm1331, %v1333, %v1329
    %v1335 = vmul.f32 1.0, %v1334
    %v1336 = vmul.f32 %v1335, %v1308
    %v1338 = vrot.slane %v1270, 4
    %v1340 = vadd.f32 %v1338, %v1336
    %v1341 = vtanh.pop %v1340
    %v1343 = vrot.slane %v1335, 2
    %v1345 = vsub.f32 1.0, %v1343
    %v1346 = vmul.f32 %v1345, %v1341
    %v1347 = vmul.f32 %v1343, %v1269
    %v1348 = vadd.f32 %v1346, %v1347
    %v1349 = vld [vmem:[%s908] sm:$0x3f]
    %v1350 = vpack.c.bf16 %v1348, %v1348
    %1351 = vmatpush.bf16.msra.mxu0 %v1087
    %1352 = vmatpush.bf16.msra.mxu0 %v1084
    %1353 = vmatpush.bf16.msra.mxu0 %v1081
    %1354 = vmatpush.bf16.msra.mxu0 %v1078
    %1355 = vmatpush.bf16.msra.mxu0 %v1075
    %1356 = vmatpush.bf16.msra.mxu0 %v1072
    %1357 = vmatpush.bf16.msra.mxu0 %v1069
    %1358 = vmatpush.bf16.msra.mxu0 %v1066
    %1359 = vmatmul.bf16.gmra.mxu0 %v1350
    %v1360 = vpop.f32.mrf.mxu0
    %v1361 = vadd.f32 %v979, %v1360
    %v1362 = vpop.f32.mrf.mxu0
    %1363 = vdwg.mxu0
    %1364 = vmatpush.bf16.msra.mxu0 %v1088
    %1365 = vmatpush.bf16.msra.mxu0 %v1085
    %1366 = vmatpush.bf16.msra.mxu0 %v1082
    %1367 = vmatpush.bf16.msra.mxu0 %v1079
    %1368 = vmatpush.bf16.msra.mxu0 %v1076
    %1369 = vmatpush.bf16.msra.mxu0 %v1073
    %1370 = vmatpush.bf16.msra.mxu0 %v1070
    %1371 = vmatpush.bf16.msra.mxu0 %v1067
    %1372 = vmatmul.bf16.gmra.mxu0 %v1350
    %v1373 = vpop.f32.mrf.mxu0
    %v1374 = vadd.f32 %v980, %v1373
    %v1375 = vpop.f32.mrf.mxu0
    %1376 = vdwg.mxu0
    %1377 = vmatpush.bf16.msra.mxu0 %v1089
    %1378 = vmatpush.bf16.msra.mxu0 %v1086
    %1379 = vmatpush.bf16.msra.mxu0 %v1083
    %1380 = vmatpush.bf16.msra.mxu0 %v1080
    %1381 = vmatpush.bf16.msra.mxu0 %v1077
    %1382 = vmatpush.bf16.msra.mxu0 %v1074
    %1383 = vmatpush.bf16.msra.mxu0 %v1071
    %1384 = vmatpush.bf16.msra.mxu0 %v1068
    %1385 = vmatmul.bf16.gmra.mxu0 %v1350
    %v1386 = vpop.f32.mrf.mxu0
    %v1387 = vadd.f32 %v981, %v1386
    %v1388 = vpop.f32.mrf.mxu0
    %1389 = vdwg.mxu0
    %v1392 = vrot.slane %v1374, 6
    %v1393 = vsel %vm820, %v1361, %v1392
    %v1395 = vadd.f32 %v1349, %v1393
    %v1396 = vxor.u32 %v1395, 2147483648
    %v1397 = vmul.f32 %v1396, 1.442695
    %v1398 = vpow.pop %v1397
    %v1399 = vadd.f32 %v1398, 1.0
    %v1400 = vrcp.pop %v1399
    %v1401 = vmul.f32 %v1399, %v1400
    %v1402 = vsub.f32 1.0, %v1401
    %v1403 = vmul.f32 %v1400, %v1402
    %v1404 = vadd.f32 %v1400, %v1403
    %vm1405 = vweird.f32 %v1399
    %vm1406 = vweird.f32 %v1400
    %vm1407 = vmor %vm1405, %vm1406
    %v1408 = vsel %vm1407, %v1400, %v1404
    %v1409 = vand.u32 2147483647, %v1399
    %vm1410 = vcmp.eq.f32.partialorder %v1409, 8.507059e+37
    %v1411 = vand.u32 %v1399, 2147483648
    %v1412 = vor.u32 1.1754944e-38, %v1411
    %v1413 = vsel %vm1410, %v1412, %v1408
    %v1414 = vmul.f32 1.0, %v1413
    %v1415 = vmul.f32 %v1414, %v1387
    %v1417 = vrot.slane %v1349, 4
    %v1419 = vadd.f32 %v1417, %v1415
    %v1420 = vtanh.pop %v1419
    %v1422 = vrot.slane %v1414, 2
    %v1424 = vsub.f32 1.0, %v1422
    %v1425 = vmul.f32 %v1424, %v1420
    %v1426 = vmul.f32 %v1422, %v1348
    %v1427 = vadd.f32 %v1425, %v1426
    %v1428 = vld [vmem:[%s915] sm:$0x3f]
    %v1429 = vpack.c.bf16 %v1427, %v1427
    %1430 = vmatpush.bf16.msra.mxu0 %v1087
    %1431 = vmatpush.bf16.msra.mxu0 %v1084
    %1432 = vmatpush.bf16.msra.mxu0 %v1081
    %1433 = vmatpush.bf16.msra.mxu0 %v1078
    %1434 = vmatpush.bf16.msra.mxu0 %v1075
    %1435 = vmatpush.bf16.msra.mxu0 %v1072
    %1436 = vmatpush.bf16.msra.mxu0 %v1069
    %1437 = vmatpush.bf16.msra.mxu0 %v1066
    %1438 = vmatmul.bf16.gmra.mxu0 %v1429
    %v1439 = vpop.f32.mrf.mxu0
    %v1440 = vadd.f32 %v979, %v1439
    %v1441 = vpop.f32.mrf.mxu0
    %1442 = vdwg.mxu0
    %1443 = vmatpush.bf16.msra.mxu0 %v1088
    %1444 = vmatpush.bf16.msra.mxu0 %v1085
    %1445 = vmatpush.bf16.msra.mxu0 %v1082
    %1446 = vmatpush.bf16.msra.mxu0 %v1079
    %1447 = vmatpush.bf16.msra.mxu0 %v1076
    %1448 = vmatpush.bf16.msra.mxu0 %v1073
    %1449 = vmatpush.bf16.msra.mxu0 %v1070
    %1450 = vmatpush.bf16.msra.mxu0 %v1067
    %1451 = vmatmul.bf16.gmra.mxu0 %v1429
    %v1452 = vpop.f32.mrf.mxu0
    %v1453 = vadd.f32 %v980, %v1452
    %v1454 = vpop.f32.mrf.mxu0
    %1455 = vdwg.mxu0
    %1456 = vmatpush.bf16.msra.mxu0 %v1089
    %1457 = vmatpush.bf16.msra.mxu0 %v1086
    %1458 = vmatpush.bf16.msra.mxu0 %v1083
    %1459 = vmatpush.bf16.msra.mxu0 %v1080
    %1460 = vmatpush.bf16.msra.mxu0 %v1077
    %1461 = vmatpush.bf16.msra.mxu0 %v1074
    %1462 = vmatpush.bf16.msra.mxu0 %v1071
    %1463 = vmatpush.bf16.msra.mxu0 %v1068
    %1464 = vmatmul.bf16.gmra.mxu0 %v1429
    %v1465 = vpop.f32.mrf.mxu0
    %v1466 = vadd.f32 %v981, %v1465
    %v1467 = vpop.f32.mrf.mxu0
    %1468 = vdwg.mxu0
    %v1471 = vrot.slane %v1453, 6
    %v1472 = vsel %vm820, %v1440, %v1471
    %v1474 = vadd.f32 %v1428, %v1472
    %v1475 = vxor.u32 %v1474, 2147483648
    %v1476 = vmul.f32 %v1475, 1.442695
    %v1477 = vpow.pop %v1476
    %v1478 = vadd.f32 %v1477, 1.0
    %v1479 = vrcp.pop %v1478
    %v1480 = vmul.f32 %v1478, %v1479
    %v1481 = vsub.f32 1.0, %v1480
    %v1482 = vmul.f32 %v1479, %v1481
    %v1483 = vadd.f32 %v1479, %v1482
    %vm1484 = vweird.f32 %v1478
    %vm1485 = vweird.f32 %v1479
    %vm1486 = vmor %vm1484, %vm1485
    %v1487 = vsel %vm1486, %v1479, %v1483
    %v1488 = vand.u32 2147483647, %v1478
    %vm1489 = vcmp.eq.f32.partialorder %v1488, 8.507059e+37
    %v1490 = vand.u32 %v1478, 2147483648
    %v1491 = vor.u32 1.1754944e-38, %v1490
    %v1492 = vsel %vm1489, %v1491, %v1487
    %v1493 = vmul.f32 1.0, %v1492
    %v1494 = vmul.f32 %v1493, %v1466
    %v1496 = vrot.slane %v1428, 4
    %v1498 = vadd.f32 %v1496, %v1494
    %v1499 = vtanh.pop %v1498
    %v1501 = vrot.slane %v1493, 2
    %v1503 = vsub.f32 1.0, %v1501
    %v1504 = vmul.f32 %v1503, %v1499
    %v1505 = vmul.f32 %v1501, %v1427
    %v1506 = vadd.f32 %v1504, %v1505
    %v1507 = vld [vmem:[%s922] sm:$0x3f]
    %v1508 = vpack.c.bf16 %v1506, %v1506
    %1509 = vmatpush.bf16.msra.mxu0 %v1087
    %1510 = vmatpush.bf16.msra.mxu0 %v1084
    %1511 = vmatpush.bf16.msra.mxu0 %v1081
    %1512 = vmatpush.bf16.msra.mxu0 %v1078
    %1513 = vmatpush.bf16.msra.mxu0 %v1075
    %1514 = vmatpush.bf16.msra.mxu0 %v1072
    %1515 = vmatpush.bf16.msra.mxu0 %v1069
    %1516 = vmatpush.bf16.msra.mxu0 %v1066
    %1517 = vmatmul.bf16.gmra.mxu0 %v1508
    %v1518 = vpop.f32.mrf.mxu0
    %v1519 = vadd.f32 %v979, %v1518
    %v1520 = vpop.f32.mrf.mxu0
    %1521 = vdwg.mxu0
    %1522 = vmatpush.bf16.msra.mxu0 %v1088
    %1523 = vmatpush.bf16.msra.mxu0 %v1085
    %1524 = vmatpush.bf16.msra.mxu0 %v1082
    %1525 = vmatpush.bf16.msra.mxu0 %v1079
    %1526 = vmatpush.bf16.msra.mxu0 %v1076
    %1527 = vmatpush.bf16.msra.mxu0 %v1073
    %1528 = vmatpush.bf16.msra.mxu0 %v1070
    %1529 = vmatpush.bf16.msra.mxu0 %v1067
    %1530 = vmatmul.bf16.gmra.mxu0 %v1508
    %v1531 = vpop.f32.mrf.mxu0
    %v1532 = vadd.f32 %v980, %v1531
    %v1533 = vpop.f32.mrf.mxu0
    %1534 = vdwg.mxu0
    %1535 = vmatpush.bf16.msra.mxu0 %v1089
    %1536 = vmatpush.bf16.msra.mxu0 %v1086
    %1537 = vmatpush.bf16.msra.mxu0 %v1083
    %1538 = vmatpush.bf16.msra.mxu0 %v1080
    %1539 = vmatpush.bf16.msra.mxu0 %v1077
    %1540 = vmatpush.bf16.msra.mxu0 %v1074
    %1541 = vmatpush.bf16.msra.mxu0 %v1071
    %1542 = vmatpush.bf16.msra.mxu0 %v1068
    %1543 = vmatmul.bf16.gmra.mxu0 %v1508
    %v1544 = vpop.f32.mrf.mxu0
    %v1545 = vadd.f32 %v981, %v1544
    %v1546 = vpop.f32.mrf.mxu0
    %1547 = vdwg.mxu0
    %v1550 = vrot.slane %v1532, 6
    %v1551 = vsel %vm820, %v1519, %v1550
    %v1553 = vadd.f32 %v1507, %v1551
    %v1554 = vxor.u32 %v1553, 2147483648
    %v1555 = vmul.f32 %v1554, 1.442695
    %v1556 = vpow.pop %v1555
    %v1557 = vadd.f32 %v1556, 1.0
    %v1558 = vrcp.pop %v1557
    %v1559 = vmul.f32 %v1557, %v1558
    %v1560 = vsub.f32 1.0, %v1559
    %v1561 = vmul.f32 %v1558, %v1560
    %v1562 = vadd.f32 %v1558, %v1561
    %vm1563 = vweird.f32 %v1557
    %vm1564 = vweird.f32 %v1558
    %vm1565 = vmor %vm1563, %vm1564
    %v1566 = vsel %vm1565, %v1558, %v1562
    %v1567 = vand.u32 2147483647, %v1557
    %vm1568 = vcmp.eq.f32.partialorder %v1567, 8.507059e+37
    %v1569 = vand.u32 %v1557, 2147483648
    %v1570 = vor.u32 1.1754944e-38, %v1569
    %v1571 = vsel %vm1568, %v1570, %v1566
    %v1572 = vmul.f32 1.0, %v1571
    %v1573 = vmul.f32 %v1572, %v1545
    %v1575 = vrot.slane %v1507, 4
    %v1577 = vadd.f32 %v1575, %v1573
    %v1578 = vtanh.pop %v1577
    %v1580 = vrot.slane %v1572, 2
    %v1582 = vsub.f32 1.0, %v1580
    %v1583 = vmul.f32 %v1582, %v1578
    %v1584 = vmul.f32 %v1580, %v1506
    %v1585 = vadd.f32 %v1583, %v1584
    %v1586 = vld [vmem:[%s929] sm:$0x3f]
    %v1587 = vpack.c.bf16 %v1585, %v1585
    %1588 = vmatpush.bf16.msra.mxu0 %v1087
    %1589 = vmatpush.bf16.msra.mxu0 %v1084
    %1590 = vmatpush.bf16.msra.mxu0 %v1081
    %1591 = vmatpush.bf16.msra.mxu0 %v1078
    %1592 = vmatpush.bf16.msra.mxu0 %v1075
    %1593 = vmatpush.bf16.msra.mxu0 %v1072
    %1594 = vmatpush.bf16.msra.mxu0 %v1069
    %1595 = vmatpush.bf16.msra.mxu0 %v1066
    %1596 = vmatmul.bf16.gmra.mxu0 %v1587
    %v1597 = vpop.f32.mrf.mxu0
    %v1598 = vadd.f32 %v979, %v1597
    %v1599 = vpop.f32.mrf.mxu0
    %1600 = vdwg.mxu0
    %1601 = vmatpush.bf16.msra.mxu0 %v1088
    %1602 = vmatpush.bf16.msra.mxu0 %v1085
    %1603 = vmatpush.bf16.msra.mxu0 %v1082
    %1604 = vmatpush.bf16.msra.mxu0 %v1079
    %1605 = vmatpush.bf16.msra.mxu0 %v1076
    %1606 = vmatpush.bf16.msra.mxu0 %v1073
    %1607 = vmatpush.bf16.msra.mxu0 %v1070
    %1608 = vmatpush.bf16.msra.mxu0 %v1067
    %1609 = vmatmul.bf16.gmra.mxu0 %v1587
    %v1610 = vpop.f32.mrf.mxu0
    %v1611 = vadd.f32 %v980, %v1610
    %v1612 = vpop.f32.mrf.mxu0
    %1613 = vdwg.mxu0
    %1614 = vmatpush.bf16.msra.mxu0 %v1089
    %1615 = vmatpush.bf16.msra.mxu0 %v1086
    %1616 = vmatpush.bf16.msra.mxu0 %v1083
    %1617 = vmatpush.bf16.msra.mxu0 %v1080
    %1618 = vmatpush.bf16.msra.mxu0 %v1077
    %1619 = vmatpush.bf16.msra.mxu0 %v1074
    %1620 = vmatpush.bf16.msra.mxu0 %v1071
    %1621 = vmatpush.bf16.msra.mxu0 %v1068
    %1622 = vmatmul.bf16.gmra.mxu0 %v1587
    %v1623 = vpop.f32.mrf.mxu0
    %v1624 = vadd.f32 %v981, %v1623
    %v1625 = vpop.f32.mrf.mxu0
    %1626 = vdwg.mxu0
    %v1629 = vrot.slane %v1611, 6
    %v1630 = vsel %vm820, %v1598, %v1629
    %v1632 = vadd.f32 %v1586, %v1630
    %v1633 = vxor.u32 %v1632, 2147483648
    %v1634 = vmul.f32 %v1633, 1.442695
    %v1635 = vpow.pop %v1634
    %v1636 = vadd.f32 %v1635, 1.0
    %v1637 = vrcp.pop %v1636
    %v1638 = vmul.f32 %v1636, %v1637
    %v1639 = vsub.f32 1.0, %v1638
    %v1640 = vmul.f32 %v1637, %v1639
    %v1641 = vadd.f32 %v1637, %v1640
    %vm1642 = vweird.f32 %v1636
    %vm1643 = vweird.f32 %v1637
    %vm1644 = vmor %vm1642, %vm1643
    %v1645 = vsel %vm1644, %v1637, %v1641
    %v1646 = vand.u32 2147483647, %v1636
    %vm1647 = vcmp.eq.f32.partialorder %v1646, 8.507059e+37
    %v1648 = vand.u32 %v1636, 2147483648
    %v1649 = vor.u32 1.1754944e-38, %v1648
    %v1650 = vsel %vm1647, %v1649, %v1645
    %v1651 = vmul.f32 1.0, %v1650
    %v1652 = vmul.f32 %v1651, %v1624
    %v1654 = vrot.slane %v1586, 4
    %v1656 = vadd.f32 %v1654, %v1652
    %v1657 = vtanh.pop %v1656
    %v1659 = vrot.slane %v1651, 2
    %v1661 = vsub.f32 1.0, %v1659
    %v1662 = vmul.f32 %v1661, %v1657
    %v1663 = vmul.f32 %v1659, %v1585
    %v1664 = vadd.f32 %v1662, %v1663
    %v1665 = vld [vmem:[%s936] sm:$0x3f]
    %v1666 = vpack.c.bf16 %v1664, %v1664
    %1667 = vmatpush.bf16.msra.mxu0 %v1087
    %1668 = vmatpush.bf16.msra.mxu0 %v1084
    %1669 = vmatpush.bf16.msra.mxu0 %v1081
    %1670 = vmatpush.bf16.msra.mxu0 %v1078
    %1671 = vmatpush.bf16.msra.mxu0 %v1075
    %1672 = vmatpush.bf16.msra.mxu0 %v1072
    %1673 = vmatpush.bf16.msra.mxu0 %v1069
    %1674 = vmatpush.bf16.msra.mxu0 %v1066
    %1675 = vmatmul.bf16.gmra.mxu0 %v1666
    %v1676 = vpop.f32.mrf.mxu0
    %v1677 = vadd.f32 %v979, %v1676
    %v1678 = vpop.f32.mrf.mxu0
    %1679 = vdwg.mxu0
    %1680 = vmatpush.bf16.msra.mxu0 %v1088
    %1681 = vmatpush.bf16.msra.mxu0 %v1085
    %1682 = vmatpush.bf16.msra.mxu0 %v1082
    %1683 = vmatpush.bf16.msra.mxu0 %v1079
    %1684 = vmatpush.bf16.msra.mxu0 %v1076
    %1685 = vmatpush.bf16.msra.mxu0 %v1073
    %1686 = vmatpush.bf16.msra.mxu0 %v1070
    %1687 = vmatpush.bf16.msra.mxu0 %v1067
    %1688 = vmatmul.bf16.gmra.mxu0 %v1666
    %v1689 = vpop.f32.mrf.mxu0
    %v1690 = vadd.f32 %v980, %v1689
    %v1691 = vpop.f32.mrf.mxu0
    %1692 = vdwg.mxu0
    %1693 = vmatpush.bf16.msra.mxu0 %v1089
    %1694 = vmatpush.bf16.msra.mxu0 %v1086
    %1695 = vmatpush.bf16.msra.mxu0 %v1083
    %1696 = vmatpush.bf16.msra.mxu0 %v1080
    %1697 = vmatpush.bf16.msra.mxu0 %v1077
    %1698 = vmatpush.bf16.msra.mxu0 %v1074
    %1699 = vmatpush.bf16.msra.mxu0 %v1071
    %1700 = vmatpush.bf16.msra.mxu0 %v1068
    %1701 = vmatmul.bf16.gmra.mxu0 %v1666
    %v1702 = vpop.f32.mrf.mxu0
    %v1703 = vadd.f32 %v981, %v1702
    %v1704 = vpop.f32.mrf.mxu0
    %1705 = vdwg.mxu0
    %v1708 = vrot.slane %v1690, 6
    %v1709 = vsel %vm820, %v1677, %v1708
    %v1711 = vadd.f32 %v1665, %v1709
    %v1712 = vxor.u32 %v1711, 2147483648
    %v1713 = vmul.f32 %v1712, 1.442695
    %v1714 = vpow.pop %v1713
    %v1715 = vadd.f32 %v1714, 1.0
    %v1716 = vrcp.pop %v1715
    %v1717 = vmul.f32 %v1715, %v1716
    %v1718 = vsub.f32 1.0, %v1717
    %v1719 = vmul.f32 %v1716, %v1718
    %v1720 = vadd.f32 %v1716, %v1719
    %vm1721 = vweird.f32 %v1715
    %vm1722 = vweird.f32 %v1716
    %vm1723 = vmor %vm1721, %vm1722
    %v1724 = vsel %vm1723, %v1716, %v1720
    %v1725 = vand.u32 2147483647, %v1715
    %vm1726 = vcmp.eq.f32.partialorder %v1725, 8.507059e+37
    %v1727 = vand.u32 %v1715, 2147483648
    %v1728 = vor.u32 1.1754944e-38, %v1727
    %v1729 = vsel %vm1726, %v1728, %v1724
    %v1730 = vmul.f32 1.0, %v1729
    %v1731 = vmul.f32 %v1730, %v1703
    %v1733 = vrot.slane %v1665, 4
    %v1735 = vadd.f32 %v1733, %v1731
    %v1736 = vtanh.pop %v1735
    %v1738 = vrot.slane %v1730, 2
    %v1740 = vsub.f32 1.0, %v1738
    %v1741 = vmul.f32 %v1740, %v1736
    %v1742 = vmul.f32 %v1738, %v1664
    %v1743 = vadd.f32 %v1741, %v1742
    %v1744 = vld [vmem:[%s943] sm:$0x3f]
    %v1745 = vpack.c.bf16 %v1743, %v1743
    %1746 = vmatpush.bf16.msra.mxu0 %v1087
    %1747 = vmatpush.bf16.msra.mxu0 %v1084
    %1748 = vmatpush.bf16.msra.mxu0 %v1081
    %1749 = vmatpush.bf16.msra.mxu0 %v1078
    %1750 = vmatpush.bf16.msra.mxu0 %v1075
    %1751 = vmatpush.bf16.msra.mxu0 %v1072
    %1752 = vmatpush.bf16.msra.mxu0 %v1069
    %1753 = vmatpush.bf16.msra.mxu0 %v1066
    %1754 = vmatmul.bf16.gmra.mxu0 %v1745
    %v1755 = vpop.f32.mrf.mxu0
    %v1756 = vadd.f32 %v979, %v1755
    %v1757 = vpop.f32.mrf.mxu0
    %1758 = vdwg.mxu0
    %1759 = vmatpush.bf16.msra.mxu0 %v1088
    %1760 = vmatpush.bf16.msra.mxu0 %v1085
    %1761 = vmatpush.bf16.msra.mxu0 %v1082
    %1762 = vmatpush.bf16.msra.mxu0 %v1079
    %1763 = vmatpush.bf16.msra.mxu0 %v1076
    %1764 = vmatpush.bf16.msra.mxu0 %v1073
    %1765 = vmatpush.bf16.msra.mxu0 %v1070
    %1766 = vmatpush.bf16.msra.mxu0 %v1067
    %1767 = vmatmul.bf16.gmra.mxu0 %v1745
    %v1768 = vpop.f32.mrf.mxu0
    %v1769 = vadd.f32 %v980, %v1768
    %v1770 = vpop.f32.mrf.mxu0
    %1771 = vdwg.mxu0
    %1772 = vmatpush.bf16.msra.mxu0 %v1089
    %1773 = vmatpush.bf16.msra.mxu0 %v1086
    %1774 = vmatpush.bf16.msra.mxu0 %v1083
    %1775 = vmatpush.bf16.msra.mxu0 %v1080
    %1776 = vmatpush.bf16.msra.mxu0 %v1077
    %1777 = vmatpush.bf16.msra.mxu0 %v1074
    %1778 = vmatpush.bf16.msra.mxu0 %v1071
    %1779 = vmatpush.bf16.msra.mxu0 %v1068
    %1780 = vmatmul.bf16.gmra.mxu0 %v1745
    %v1781 = vpop.f32.mrf.mxu0
    %v1782 = vadd.f32 %v981, %v1781
    %v1783 = vpop.f32.mrf.mxu0
    %1784 = vdwg.mxu0
    %v1787 = vrot.slane %v1769, 6
    %v1788 = vsel %vm820, %v1756, %v1787
    %v1790 = vadd.f32 %v1744, %v1788
    %v1791 = vxor.u32 %v1790, 2147483648
    %v1792 = vmul.f32 %v1791, 1.442695
    %v1793 = vpow.pop %v1792
    %v1794 = vadd.f32 %v1793, 1.0
    %v1795 = vrcp.pop %v1794
    %v1796 = vmul.f32 %v1794, %v1795
    %v1797 = vsub.f32 1.0, %v1796
    %v1798 = vmul.f32 %v1795, %v1797
    %v1799 = vadd.f32 %v1795, %v1798
    %vm1800 = vweird.f32 %v1794
    %vm1801 = vweird.f32 %v1795
    %vm1802 = vmor %vm1800, %vm1801
    %v1803 = vsel %vm1802, %v1795, %v1799
    %v1804 = vand.u32 2147483647, %v1794
    %vm1805 = vcmp.eq.f32.partialorder %v1804, 8.507059e+37
    %v1806 = vand.u32 %v1794, 2147483648
    %v1807 = vor.u32 1.1754944e-38, %v1806
    %v1808 = vsel %vm1805, %v1807, %v1803
    %v1809 = vmul.f32 1.0, %v1808
    %v1810 = vmul.f32 %v1809, %v1782
    %v1812 = vrot.slane %v1744, 4
    %v1814 = vadd.f32 %v1812, %v1810
    %v1815 = vtanh.pop %v1814
    %v1817 = vrot.slane %v1809, 2
    %v1819 = vsub.f32 1.0, %v1817
    %v1820 = vmul.f32 %v1819, %v1815
    %v1821 = vmul.f32 %v1817, %v1743
    %v1822 = vadd.f32 %v1820, %v1821
    %v1823 = vpack.c.bf16 %v1822, %v1822
    %v1824 = vld [vmem:[%s7] sm:$0xf]
    %v1825 = vld [vmem:[%s7 + $0x4] sm:$0xf]
    %v1826 = vld [vmem:[%s7 + $0x8] sm:$0xf]
    %v1827 = vld [vmem:[%s7 + $0xc] sm:$0xf]
    %v1828 = vld [vmem:[%s7 + $0x10] sm:$0xf]
    %v1829 = vld [vmem:[%s7 + $0x14] sm:$0xf]
    %v1830 = vld [vmem:[%s7 + $0x18] sm:$0xf]
    %v1831 = vld [vmem:[%s7 + $0x1c] sm:$0xf]
    %v1832 = vld [vmem:[%s7 + $0x20] sm:$0xf]
    %v1833 = vld [vmem:[%s7 + $0x24] sm:$0xf]
    %v1834 = vld [vmem:[%s7 + $0x28] sm:$0xf]
    %v1835 = vld [vmem:[%s7 + $0x2c] sm:$0xf]
    %v1836 = vld [vmem:[%s7 + $0x30] sm:$0xf]
    %v1837 = vld [vmem:[%s7 + $0x34] sm:$0xf]
    %v1838 = vld [vmem:[%s7 + $0x38] sm:$0xf]
    %v1839 = vld [vmem:[%s7 + $0x3c] sm:$0xf]
    %v1840 = vld [vmem:[#allocation3] sm:$0x1]
    %v1842 = vperm.slane %v1840, 0
    %v1860 = vunpack.c.l.b16 %v1824
    %v1861 = vunpack.c.l.b16 %v1825
    %v1862 = vunpack.c.l.b16 %v1826
    %v1863 = vunpack.c.l.b16 %v1827
    %v1864 = vunpack.c.l.b16 %v1828
    %v1865 = vunpack.c.l.b16 %v1829
    %v1866 = vunpack.c.l.b16 %v1830
    %v1867 = vunpack.c.l.b16 %v1831
    %v1868 = vunpack.c.l.b16 %v1832
    %v1869 = vunpack.c.l.b16 %v1833
    %v1870 = vunpack.c.l.b16 %v1834
    %v1871 = vunpack.c.l.b16 %v1835
    %v1872 = vunpack.c.l.b16 %v1836
    %v1873 = vunpack.c.l.b16 %v1837
    %v1874 = vunpack.c.l.b16 %v1838
    %v1875 = vunpack.c.l.b16 %v1839
    %v1876 = vpack.c.b16 %v1861, %v1860
    %v1877 = vpack.c.b16 %v1863, %v1862
    %v1878 = vpack.c.b16 %v1865, %v1864
    %v1879 = vpack.c.b16 %v1867, %v1866
    %v1880 = vpack.c.b16 %v1869, %v1868
    %v1881 = vpack.c.b16 %v1871, %v1870
    %v1882 = vpack.c.b16 %v1873, %v1872
    %v1883 = vpack.c.b16 %v1875, %v1874
    %1892 = vmatpush.bf16.msra.mxu0 %v1883
    %1893 = vmatpush.bf16.msra.mxu0 %v1882
    %1894 = vmatpush.bf16.msra.mxu0 %v1881
    %1895 = vmatpush.bf16.msra.mxu0 %v1880
    %1896 = vmatpush.bf16.msra.mxu0 %v1879
    %1897 = vmatpush.bf16.msra.mxu0 %v1878
    %1898 = vmatpush.bf16.msra.mxu0 %v1877
    %1899 = vmatpush.bf16.msra.mxu0 %v1876
    %1900 = vmatmul.bf16.gmra.mxu0 %v1823
    %v1901 = vpop.f32.mrf.mxu0
    %v1902 = vadd.f32 %v1842, %v1901
    %v1903 = vpop.f32.mrf.mxu0
    %1904 = vdwg.mxu0
    %v1905 = vxor.u32 %v1902, 2147483648
    %v1906 = vmul.f32 %v1905, 1.442695
    %v1907 = vpow.pop %v1906
    %v1908 = vadd.f32 %v1907, 1.0
    %v1909 = vrcp.pop %v1908
    %v1910 = vmul.f32 %v1908, %v1909
    %v1911 = vsub.f32 1.0, %v1910
    %v1912 = vmul.f32 %v1909, %v1911
    %v1913 = vadd.f32 %v1909, %v1912
    %vm1914 = vweird.f32 %v1908
    %vm1915 = vweird.f32 %v1909
    %vm1916 = vmor %vm1914, %vm1915
    %v1917 = vsel %vm1916, %v1909, %v1913
    %v1918 = vand.u32 2147483647, %v1908
    %vm1919 = vcmp.eq.f32.partialorder %v1918, 8.507059e+37
    %v1920 = vand.u32 %v1908, 2147483648
    %v1921 = vor.u32 1.1754944e-38, %v1920
    %v1922 = vsel %vm1919, %v1921, %v1917
    %v1923 = vmul.f32 1.0, %v1922
    %vm1924 = vcmask 1024
    %1925 = vst.msk [vmem:[%s9] sm:$0x3] %vm1924, %v1923
    // Predicated region
    $region50: #{tpu_custom_call.1} parent=1 // pred_check
      _
    $region51: #{tpu_custom_call.1} parent=1 // pred_check_branch
      %1927 = sbr.rel (0) target = $region53
    $region52: #{tpu_custom_call.1} parent=1 // pred_region
      _
    $region53: #{tpu_custom_call.1} parent=1 // pred_fallthru
      _
    // Predicated region
    $region54: #{tpu_custom_call.1} parent=1 // pred_check
      _
    $region55: #{tpu_custom_call.1} parent=1 // pred_check_branch
      %1929 = sbr.rel (0) target = $region57
    $region56: #{tpu_custom_call.1} parent=1 // pred_region
      _
    $region57: #{tpu_custom_call.1} parent=1 // pred_fallthru
      _
    %1930 = vsyncpa [#allocation5], 1
    %1931 = vsyncpa [#allocation7], 1

</llo_original>
